<compile_context>
chip_gen: v6e
topology: v6e:2x2x1
jax: 0.10.0
libtpu: 0.0.40
codegen_flags: <defaults>
</compile_context>

<pallas_src>
import math

import jax
import jax.numpy as jnp
from jax.experimental import pallas as pl
from jax.experimental.pallas import tpu as pltpu


def _global_block_kernel(x_ref, wqkv_ref, bqkv_ref, wo_ref, bo_ref, out_ref):
    bb, cc, ll = x_ref.shape
    cp = wo_ref.shape[1]                          # lane-aligned padded channels

    # Read weights once per grid step (constant-index BlockSpecs keep them
    # VMEM-resident).  Matmul operands go to bf16; accumulation stays f32.
    wqkv = wqkv_ref[...].astype(jnp.bfloat16)     # (C, 3*CP), wq/bq pre-scaled
    bqkv = bqkv_ref[...]                          # (1, 3*CP) f32
    wo = wo_ref[...].astype(jnp.bfloat16)         # (C, CP)
    bo = bo_ref[...]                              # (C, 1)   f32

    # (L, L) identity built once: transposes the tiny channel-major tile on the
    # MXU via a transposed-RHS matmul (no explicit in-kernel relayout needed).
    eye = (jax.lax.broadcasted_iota(jnp.int32, (ll, ll), 0) ==
           jax.lax.broadcasted_iota(jnp.int32, (ll, ll), 1)).astype(jnp.bfloat16)

    for b in range(bb):                           # static unroll over batch tile
        x_b = x_ref[b]                            # (C, L) f32, channel-major
        h = jnp.maximum(x_b, 0.0).astype(jnp.bfloat16)          # shared ReLU

        # h^T: eye (L,L) contracted against h's L axis -> (L, C).
        ht = jax.lax.dot_general(eye, h, (((1,), (1,)), ((), ())),
                                 preferred_element_type=jnp.float32)
        ht = ht.astype(jnp.bfloat16)

        # Fused Q/K/V 1x1 convs: one (L, C) @ (C, 3*CP) MXU matmul.
        qkv = jnp.dot(ht, wqkv, preferred_element_type=jnp.float32) + bqkv
        q = qkv[:, :cp]                           # (L, CP) 128-aligned slices;
        k = qkv[:, cp:2 * cp]                     # padded columns are exactly 0
        v = qkv[:, 2 * cp:]

        # scores = q @ k^T (1/sqrt(planes) already folded into q).
        scores = jax.lax.dot_general(
            q.astype(jnp.bfloat16), k.astype(jnp.bfloat16),
            (((1,), (1,)), ((), ())),
            preferred_element_type=jnp.float32)   # (L, L)

        # Numerically-stable softmax over the key axis (f32, no mask needed).
        scores = scores - jnp.max(scores, axis=-1, keepdims=True)
        p = jnp.exp(scores)
        attn = p * pl.reciprocal(jnp.sum(p, axis=-1, keepdims=True), approx=True)

        r = jnp.dot(attn.astype(jnp.bfloat16), v.astype(jnp.bfloat16),
                    preferred_element_type=jnp.float32)          # (L, CP)

        # Output branch: ReLU -> 1x1 conv, contracted so the result lands
        # directly in channel-major (C, L) -- no output-side transpose.
        rr = jnp.maximum(r, 0.0).astype(jnp.bfloat16)
        res = jax.lax.dot_general(wo, rr, (((1,), (1,)), ((), ())),
                                  preferred_element_type=jnp.float32) + bo

        # Residual connection, stored straight back in NCL layout.
        out_ref[b] = (x_b + res).astype(out_ref.dtype)


def _tensorcores_per_device():
    """2 on v7x (megacore-style sharding via 'parallel'), 1 on v5e/v6e."""
    try:
        kind = jax.devices()[0].device_kind.lower()
    except Exception:
        return 1
    return 2 if "v7" in kind else 1


def global_block_forward(x_ncl, params):
    """x_ncl: (B, planes, L) float32 -> (B, planes, L) float32 (matches PyTorch)."""
    B, C, L = x_ncl.shape
    scale = 1.0 / math.sqrt(float(C))
    CP = ((C + 127) // 128) * 128                 # lane-aligned channel padding

    def t(w):                                     # Conv1d weight (out,in,1) -> (in,out)
        return jnp.transpose(w[:, :, 0], (1, 0))

    def pad_cols(w):                              # (C, C) -> (C, CP) zero padded
        return jnp.pad(w, ((0, 0), (0, CP - C)))

    def pad_bias(b):                              # (C,) -> (CP,)
        return jnp.pad(b, (0, CP - C))

    # Fused Q/K/V weight with the attention scale folded into the query branch;
    # each branch is zero-padded to 128 output columns for tile-aligned slices.
    wqkv = jnp.concatenate(
        [pad_cols(t(params['wq']) * scale),
         pad_cols(t(params['wk'])),
         pad_cols(t(params['wv']))], axis=1).astype(jnp.float32)        # (C, 3*CP)
    bqkv = jnp.concatenate(
        [pad_bias(params['bq'] * scale),
         pad_bias(params['bk']),
         pad_bias(params['bv'])])[None, :].astype(jnp.float32)          # (1, 3*CP)
    # Output conv weight kept in (out, in) orientation, zero-padded along the
    # contraction (in) axis to CP so it dots directly against the padded values.
    wo = jnp.pad(params['wo'][:, :, 0],
                 ((0, 0), (0, CP - C))).astype(jnp.float32)             # (C, CP)
    bo = params['bo'][:, None].astype(jnp.float32)                      # (C, 1)

    x = x_ncl.astype(jnp.float32)                                       # stays NCL

    # One grid step on single-TC chips; two "parallel" steps only on v7x.
    num_blocks = 2 if (_tensorcores_per_device() >= 2 and B >= 2 and B % 2 == 0) else 1
    BB = B // num_blocks

    def const_spec(arr):
        return pl.BlockSpec(arr.shape, lambda i: (0,) * arr.ndim)

    fn = pl.pallas_call(
        _global_block_kernel,
        out_shape=jax.ShapeDtypeStruct((B, C, L), jnp.float32),
        grid_spec=pltpu.PrefetchScalarGridSpec(
            num_scalar_prefetch=0,
            grid=(num_blocks,),
            in_specs=[pl.BlockSpec((BB, C, L), lambda i: (i, 0, 0)),
                      const_spec(wqkv), const_spec(bqkv),
                      const_spec(wo), const_spec(bo)],
            out_specs=pl.BlockSpec((BB, C, L), lambda i: (i, 0, 0)),
        ),
        compiler_params=pltpu.CompilerParams(
            dimension_semantics=("parallel",)),
    )
    return fn(x, wqkv, bqkv, wo, bo)              # already NCL, no transpose back


def init_params(key, planes):
    """Deterministic synthetic init mirroring the Conv1d parameter shapes."""
    ks = jax.random.split(key, 8)
    it = iter(ks)

    def w(shape, scale=0.02):
        return (scale * jax.random.normal(next(it), shape)).astype(jnp.float32)

    p = {}
    for name in ('q', 'k', 'v', 'o'):
        p['w' + name] = w((planes, planes, 1))    # Conv1d weight (out, in, 1)
        p['b' + name] = w((planes,))              # Conv1d bias (out,)
    return p


def reference_forward(x, params):
    """Pure-JAX mirror of the PyTorch GlobalBlock.forward (NCL layout)."""
    B, C, L = x.shape

    def conv(h, w, b):                            # h: (B, C, L)
        return jnp.einsum('oc,bcl->bol', w[:, :, 0], h) + b[None, :, None]

    hr = jnp.maximum(x, 0.0)
    q = jnp.transpose(conv(hr, params['wq'], params['bq']), (0, 2, 1))   # (B, L, C)
    k = conv(hr, params['wk'], params['bk'])                             # (B, C, L)
    v = jnp.transpose(conv(hr, params['wv'], params['bv']), (0, 2, 1))   # (B, L, C)
    a = jax.nn.softmax(jnp.einsum('blc,bcm->blm', q, k) / math.sqrt(C), axis=2)
    r = jnp.einsum('blm,bmc->blc', a, v)
    r = jnp.transpose(r, (0, 2, 1))                                      # (B, C, L)
    r = conv(jnp.maximum(r, 0.0), params['wo'], params['bo'])
    return x + r


if __name__ == "__main__":
    B, PLANES, L = 4, 32, 16

    key = jax.random.PRNGKey(0)
    pkey, xkey = jax.random.split(key)
    params = init_params(pkey, PLANES)
    x = jax.random.normal(xkey, (B, PLANES, L), dtype=jnp.float32)

    out = global_block_forward(x, params)
    out = jax.block_until_ready(out)

    assert out.shape == (B, PLANES, L) and out.dtype == jnp.float32
    assert bool(jnp.all(jnp.isfinite(out)))

    ref = reference_forward(x, params)
    assert bool(jnp.allclose(out, ref, atol=1e-2, rtol=1e-2)), "mismatch vs reference"

    print("KERNEL_OK")
</pallas_src>

<mosaic_0001>
module attributes {stable_mosaic.version = 11 : i64} {
  func.func @_global_block_kernel(%arg0: i32, %arg1: memref<4x32x16xf32, #tpu.memory_space<vmem>>, %arg2: memref<32x384xf32, #tpu.memory_space<vmem>>, %arg3: memref<1x384xf32, #tpu.memory_space<vmem>>, %arg4: memref<32x128xf32, #tpu.memory_space<vmem>>, %arg5: memref<32x1xf32, #tpu.memory_space<vmem>>, %arg6: memref<4x32x16xf32, #tpu.memory_space<vmem>>) attributes {dimension_semantics = [#tpu.dimension_semantics<parallel>], iteration_bounds = array<i64: 1>, scalar_prefetch = 0 : i64, scratch_operands = 0 : i64, tpu.core_type = #tpu.core_type<tc>, window_params = [{transform_indices = @transform_0, window_bounds = array<i64: 4, 32, 16>}, {pipeline_mode = #tpu.pipeline_mode<synchronous>, transform_indices = @transform_1, window_bounds = array<i64: 32, 384>}, {pipeline_mode = #tpu.pipeline_mode<synchronous>, transform_indices = @transform_2, window_bounds = array<i64: 1, 384>}, {pipeline_mode = #tpu.pipeline_mode<synchronous>, transform_indices = @transform_3, window_bounds = array<i64: 32, 128>}, {pipeline_mode = #tpu.pipeline_mode<synchronous>, transform_indices = @transform_4, window_bounds = array<i64: 32, 1>}, {transform_indices = @transform_5, window_bounds = array<i64: 4, 32, 16>}]} {
    %c0 = arith.constant 0 : index
    %c0_0 = arith.constant 0 : index
    %0 = vector.load %arg2[%c0, %c0_0] : memref<32x384xf32, #tpu.memory_space<vmem>>, vector<32x384xf32>
    %1 = arith.truncf %0 : vector<32x384xf32> to vector<32x384xbf16>
    %c0_1 = arith.constant 0 : index
    %c0_2 = arith.constant 0 : index
    %2 = vector.load %arg3[%c0_1, %c0_2] : memref<1x384xf32, #tpu.memory_space<vmem>>, vector<1x384xf32>
    %c0_3 = arith.constant 0 : index
    %c0_4 = arith.constant 0 : index
    %3 = vector.load %arg4[%c0_3, %c0_4] : memref<32x128xf32, #tpu.memory_space<vmem>>, vector<32x128xf32>
    %4 = arith.truncf %3 : vector<32x128xf32> to vector<32x128xbf16>
    %c0_5 = arith.constant 0 : index
    %c0_6 = arith.constant 0 : index
    %5 = vector.load %arg5[%c0_5, %c0_6] : memref<32x1xf32, #tpu.memory_space<vmem>>, vector<32x1xf32>
    %6 = tpu.iota {dimensions = array<i32: 0>} : vector<16x16xi32>
    %7 = tpu.iota {dimensions = array<i32: 1>} : vector<16x16xi32>
    %8 = arith.cmpi eq, %6, %7 : vector<16x16xi32>
    %9 = arith.extui %8 : vector<16x16xi1> to vector<16x16xi32>
    %10 = arith.sitofp %9 : vector<16x16xi32> to vector<16x16xf32>
    %11 = arith.truncf %10 : vector<16x16xf32> to vector<16x16xbf16>
    %c0_7 = arith.constant 0 : index
    %c0_8 = arith.constant 0 : index
    %c0_9 = arith.constant 0 : index
    %12 = vector.load %arg1[%c0_7, %c0_8, %c0_9] : memref<4x32x16xf32, #tpu.memory_space<vmem>>, vector<1x32x16xf32>
    %13 = vector.shape_cast %12 : vector<1x32x16xf32> to vector<32x16xf32>
    %cst = arith.constant 0.000000e+00 : f32
    %14 = vector.broadcast %cst : f32 to vector<32x16xf32>
    %15 = arith.maximumf %13, %14 : vector<32x16xf32>
    %16 = arith.truncf %15 : vector<32x16xf32> to vector<32x16xbf16>
    %cst_10 = arith.constant dense<0.000000e+00> : vector<16x32xf32>
    %17 = tpu.matmul %11, %16, %cst_10 {dimension_numbers = #tpu.dot_dimension_numbers<[1], [1], [0], [0], [0, 0, 1, 0], [], []>} : vector<16x16xbf16>, vector<32x16xbf16>, vector<16x32xf32> -> vector<16x32xf32>
    %18 = arith.truncf %17 : vector<16x32xf32> to vector<16x32xbf16>
    %cst_11 = arith.constant dense<0.000000e+00> : vector<16x384xf32>
    %19 = tpu.matmul %18, %1, %cst_11 {dimension_numbers = #tpu.dot_dimension_numbers<[1], [0], [0], [1], [0, 0, 1, 1], [], []>} : vector<16x32xbf16>, vector<32x384xbf16>, vector<16x384xf32> -> vector<16x384xf32>
    %20 = vector.broadcast %2 : vector<1x384xf32> to vector<16x384xf32>
    %21 = arith.addf %19, %20 : vector<16x384xf32>
    %22 = vector.extract_strided_slice %21 {offsets = [0, 0], sizes = [16, 128], strides = [1, 1]} : vector<16x384xf32> to vector<16x128xf32>
    %23 = vector.extract_strided_slice %21 {offsets = [0, 128], sizes = [16, 128], strides = [1, 1]} : vector<16x384xf32> to vector<16x128xf32>
    %24 = vector.extract_strided_slice %21 {offsets = [0, 256], sizes = [16, 128], strides = [1, 1]} : vector<16x384xf32> to vector<16x128xf32>
    %25 = arith.truncf %22 : vector<16x128xf32> to vector<16x128xbf16>
    %26 = arith.truncf %23 : vector<16x128xf32> to vector<16x128xbf16>
    %cst_12 = arith.constant dense<0.000000e+00> : vector<16x16xf32>
    %27 = tpu.matmul %25, %26, %cst_12 {dimension_numbers = #tpu.dot_dimension_numbers<[1], [1], [0], [0], [0, 0, 1, 0], [], []>} : vector<16x128xbf16>, vector<16x128xbf16>, vector<16x16xf32> -> vector<16x16xf32>
    %cst_13 = arith.constant dense<0xFF800000> : vector<16xf32>
    %28 = vector.multi_reduction <maximumf>, %27, %cst_13 [1] : vector<16x16xf32> to vector<16xf32>
    %29 = vector.shape_cast %28 : vector<16xf32> to vector<16x1xf32>
    %30 = vector.broadcast %29 : vector<16x1xf32> to vector<16x16xf32>
    %31 = arith.subf %27, %30 : vector<16x16xf32>
    %32 = math.exp %31 : vector<16x16xf32>
    %cst_14 = arith.constant dense<0.000000e+00> : vector<16xf32>
    %33 = vector.multi_reduction <add>, %32, %cst_14 [1] : vector<16x16xf32> to vector<16xf32>
    %34 = vector.shape_cast %33 : vector<16xf32> to vector<16x1xf32>
    %35 = tpu.reciprocal %34 {approx = true} : vector<16x1xf32> -> vector<16x1xf32>
    %36 = vector.broadcast %35 : vector<16x1xf32> to vector<16x16xf32>
    %37 = arith.mulf %32, %36 : vector<16x16xf32>
    %38 = arith.truncf %37 : vector<16x16xf32> to vector<16x16xbf16>
    %39 = arith.truncf %24 : vector<16x128xf32> to vector<16x128xbf16>
    %cst_15 = arith.constant dense<0.000000e+00> : vector<16x128xf32>
    %40 = tpu.matmul %38, %39, %cst_15 {dimension_numbers = #tpu.dot_dimension_numbers<[1], [0], [0], [1], [0, 0, 1, 1], [], []>} : vector<16x16xbf16>, vector<16x128xbf16>, vector<16x128xf32> -> vector<16x128xf32>
    %cst_16 = arith.constant 0.000000e+00 : f32
    %41 = vector.broadcast %cst_16 : f32 to vector<16x128xf32>
    %42 = arith.maximumf %40, %41 : vector<16x128xf32>
    %43 = arith.truncf %42 : vector<16x128xf32> to vector<16x128xbf16>
    %cst_17 = arith.constant dense<0.000000e+00> : vector<32x16xf32>
    %44 = tpu.matmul %4, %43, %cst_17 {dimension_numbers = #tpu.dot_dimension_numbers<[1], [1], [0], [0], [0, 0, 1, 0], [], []>} : vector<32x128xbf16>, vector<16x128xbf16>, vector<32x16xf32> -> vector<32x16xf32>
    %45 = vector.broadcast %5 : vector<32x1xf32> to vector<32x16xf32>
    %46 = arith.addf %44, %45 : vector<32x16xf32>
    %47 = arith.addf %13, %46 : vector<32x16xf32>
    %c0_18 = arith.constant 0 : index
    %c0_19 = arith.constant 0 : index
    %c0_20 = arith.constant 0 : index
    %48 = vector.load %arg6[%c0_18, %c0_19, %c0_20] : memref<4x32x16xf32, #tpu.memory_space<vmem>>, vector<1x32x16xf32>
    %49 = vector.shape_cast %48 : vector<1x32x16xf32> to vector<32x16xf32>
    %50 = vector.shape_cast %47 : vector<32x16xf32> to vector<1x32x16xf32>
    tpu.vector_store %arg6[%c0_18, %c0_19, %c0_20], %50 {strides = array<i32>} : memref<4x32x16xf32, #tpu.memory_space<vmem>>, vector<1x32x16xf32>,
    %c1 = arith.constant 1 : index
    %c0_21 = arith.constant 0 : index
    %c0_22 = arith.constant 0 : index
    %51 = vector.load %arg1[%c1, %c0_21, %c0_22] : memref<4x32x16xf32, #tpu.memory_space<vmem>>, vector<1x32x16xf32>
    %52 = vector.shape_cast %51 : vector<1x32x16xf32> to vector<32x16xf32>
    %cst_23 = arith.constant 0.000000e+00 : f32
    %53 = vector.broadcast %cst_23 : f32 to vector<32x16xf32>
    %54 = arith.maximumf %52, %53 : vector<32x16xf32>
    %55 = arith.truncf %54 : vector<32x16xf32> to vector<32x16xbf16>
    %cst_24 = arith.constant dense<0.000000e+00> : vector<16x32xf32>
    %56 = tpu.matmul %11, %55, %cst_24 {dimension_numbers = #tpu.dot_dimension_numbers<[1], [1], [0], [0], [0, 0, 1, 0], [], []>} : vector<16x16xbf16>, vector<32x16xbf16>, vector<16x32xf32> -> vector<16x32xf32>
    %57 = arith.truncf %56 : vector<16x32xf32> to vector<16x32xbf16>
    %cst_25 = arith.constant dense<0.000000e+00> : vector<16x384xf32>
    %58 = tpu.matmul %57, %1, %cst_25 {dimension_numbers = #tpu.dot_dimension_numbers<[1], [0], [0], [1], [0, 0, 1, 1], [], []>} : vector<16x32xbf16>, vector<32x384xbf16>, vector<16x384xf32> -> vector<16x384xf32>
    %59 = vector.broadcast %2 : vector<1x384xf32> to vector<16x384xf32>
    %60 = arith.addf %58, %59 : vector<16x384xf32>
    %61 = vector.extract_strided_slice %60 {offsets = [0, 0], sizes = [16, 128], strides = [1, 1]} : vector<16x384xf32> to vector<16x128xf32>
    %62 = vector.extract_strided_slice %60 {offsets = [0, 128], sizes = [16, 128], strides = [1, 1]} : vector<16x384xf32> to vector<16x128xf32>
    %63 = vector.extract_strided_slice %60 {offsets = [0, 256], sizes = [16, 128], strides = [1, 1]} : vector<16x384xf32> to vector<16x128xf32>
    %64 = arith.truncf %61 : vector<16x128xf32> to vector<16x128xbf16>
    %65 = arith.truncf %62 : vector<16x128xf32> to vector<16x128xbf16>
    %cst_26 = arith.constant dense<0.000000e+00> : vector<16x16xf32>
    %66 = tpu.matmul %64, %65, %cst_26 {dimension_numbers = #tpu.dot_dimension_numbers<[1], [1], [0], [0], [0, 0, 1, 0], [], []>} : vector<16x128xbf16>, vector<16x128xbf16>, vector<16x16xf32> -> vector<16x16xf32>
    %cst_27 = arith.constant dense<0xFF800000> : vector<16xf32>
    %67 = vector.multi_reduction <maximumf>, %66, %cst_27 [1] : vector<16x16xf32> to vector<16xf32>
    %68 = vector.shape_cast %67 : vector<16xf32> to vector<16x1xf32>
    %69 = vector.broadcast %68 : vector<16x1xf32> to vector<16x16xf32>
    %70 = arith.subf %66, %69 : vector<16x16xf32>
    %71 = math.exp %70 : vector<16x16xf32>
    %cst_28 = arith.constant dense<0.000000e+00> : vector<16xf32>
    %72 = vector.multi_reduction <add>, %71, %cst_28 [1] : vector<16x16xf32> to vector<16xf32>
    %73 = vector.shape_cast %72 : vector<16xf32> to vector<16x1xf32>
    %74 = tpu.reciprocal %73 {approx = true} : vector<16x1xf32> -> vector<16x1xf32>
    %75 = vector.broadcast %74 : vector<16x1xf32> to vector<16x16xf32>
    %76 = arith.mulf %71, %75 : vector<16x16xf32>
    %77 = arith.truncf %76 : vector<16x16xf32> to vector<16x16xbf16>
    %78 = arith.truncf %63 : vector<16x128xf32> to vector<16x128xbf16>
    %cst_29 = arith.constant dense<0.000000e+00> : vector<16x128xf32>
    %79 = tpu.matmul %77, %78, %cst_29 {dimension_numbers = #tpu.dot_dimension_numbers<[1], [0], [0], [1], [0, 0, 1, 1], [], []>} : vector<16x16xbf16>, vector<16x128xbf16>, vector<16x128xf32> -> vector<16x128xf32>
    %cst_30 = arith.constant 0.000000e+00 : f32
    %80 = vector.broadcast %cst_30 : f32 to vector<16x128xf32>
    %81 = arith.maximumf %79, %80 : vector<16x128xf32>
    %82 = arith.truncf %81 : vector<16x128xf32> to vector<16x128xbf16>
    %cst_31 = arith.constant dense<0.000000e+00> : vector<32x16xf32>
    %83 = tpu.matmul %4, %82, %cst_31 {dimension_numbers = #tpu.dot_dimension_numbers<[1], [1], [0], [0], [0, 0, 1, 0], [], []>} : vector<32x128xbf16>, vector<16x128xbf16>, vector<32x16xf32> -> vector<32x16xf32>
    %84 = vector.broadcast %5 : vector<32x1xf32> to vector<32x16xf32>
    %85 = arith.addf %83, %84 : vector<32x16xf32>
    %86 = arith.addf %52, %85 : vector<32x16xf32>
    %c1_32 = arith.constant 1 : index
    %c0_33 = arith.constant 0 : index
    %c0_34 = arith.constant 0 : index
    %87 = vector.load %arg6[%c1_32, %c0_33, %c0_34] : memref<4x32x16xf32, #tpu.memory_space<vmem>>, vector<1x32x16xf32>
    %88 = vector.shape_cast %87 : vector<1x32x16xf32> to vector<32x16xf32>
    %89 = vector.shape_cast %86 : vector<32x16xf32> to vector<1x32x16xf32>
    tpu.vector_store %arg6[%c1_32, %c0_33, %c0_34], %89 {strides = array<i32>} : memref<4x32x16xf32, #tpu.memory_space<vmem>>, vector<1x32x16xf32>,
    %c2 = arith.constant 2 : index
    %c0_35 = arith.constant 0 : index
    %c0_36 = arith.constant 0 : index
    %90 = vector.load %arg1[%c2, %c0_35, %c0_36] : memref<4x32x16xf32, #tpu.memory_space<vmem>>, vector<1x32x16xf32>
    %91 = vector.shape_cast %90 : vector<1x32x16xf32> to vector<32x16xf32>
    %cst_37 = arith.constant 0.000000e+00 : f32
    %92 = vector.broadcast %cst_37 : f32 to vector<32x16xf32>
    %93 = arith.maximumf %91, %92 : vector<32x16xf32>
    %94 = arith.truncf %93 : vector<32x16xf32> to vector<32x16xbf16>
    %cst_38 = arith.constant dense<0.000000e+00> : vector<16x32xf32>
    %95 = tpu.matmul %11, %94, %cst_38 {dimension_numbers = #tpu.dot_dimension_numbers<[1], [1], [0], [0], [0, 0, 1, 0], [], []>} : vector<16x16xbf16>, vector<32x16xbf16>, vector<16x32xf32> -> vector<16x32xf32>
    %96 = arith.truncf %95 : vector<16x32xf32> to vector<16x32xbf16>
    %cst_39 = arith.constant dense<0.000000e+00> : vector<16x384xf32>
    %97 = tpu.matmul %96, %1, %cst_39 {dimension_numbers = #tpu.dot_dimension_numbers<[1], [0], [0], [1], [0, 0, 1, 1], [], []>} : vector<16x32xbf16>, vector<32x384xbf16>, vector<16x384xf32> -> vector<16x384xf32>
    %98 = vector.broadcast %2 : vector<1x384xf32> to vector<16x384xf32>
    %99 = arith.addf %97, %98 : vector<16x384xf32>
    %100 = vector.extract_strided_slice %99 {offsets = [0, 0], sizes = [16, 128], strides = [1, 1]} : vector<16x384xf32> to vector<16x128xf32>
    %101 = vector.extract_strided_slice %99 {offsets = [0, 128], sizes = [16, 128], strides = [1, 1]} : vector<16x384xf32> to vector<16x128xf32>
    %102 = vector.extract_strided_slice %99 {offsets = [0, 256], sizes = [16, 128], strides = [1, 1]} : vector<16x384xf32> to vector<16x128xf32>
    %103 = arith.truncf %100 : vector<16x128xf32> to vector<16x128xbf16>
    %104 = arith.truncf %101 : vector<16x128xf32> to vector<16x128xbf16>
    %cst_40 = arith.constant dense<0.000000e+00> : vector<16x16xf32>
    %105 = tpu.matmul %103, %104, %cst_40 {dimension_numbers = #tpu.dot_dimension_numbers<[1], [1], [0], [0], [0, 0, 1, 0], [], []>} : vector<16x128xbf16>, vector<16x128xbf16>, vector<16x16xf32> -> vector<16x16xf32>
    %cst_41 = arith.constant dense<0xFF800000> : vector<16xf32>
    %106 = vector.multi_reduction <maximumf>, %105, %cst_41 [1] : vector<16x16xf32> to vector<16xf32>
    %107 = vector.shape_cast %106 : vector<16xf32> to vector<16x1xf32>
    %108 = vector.broadcast %107 : vector<16x1xf32> to vector<16x16xf32>
    %109 = arith.subf %105, %108 : vector<16x16xf32>
    %110 = math.exp %109 : vector<16x16xf32>
    %cst_42 = arith.constant dense<0.000000e+00> : vector<16xf32>
    %111 = vector.multi_reduction <add>, %110, %cst_42 [1] : vector<16x16xf32> to vector<16xf32>
    %112 = vector.shape_cast %111 : vector<16xf32> to vector<16x1xf32>
    %113 = tpu.reciprocal %112 {approx = true} : vector<16x1xf32> -> vector<16x1xf32>
    %114 = vector.broadcast %113 : vector<16x1xf32> to vector<16x16xf32>
    %115 = arith.mulf %110, %114 : vector<16x16xf32>
    %116 = arith.truncf %115 : vector<16x16xf32> to vector<16x16xbf16>
    %117 = arith.truncf %102 : vector<16x128xf32> to vector<16x128xbf16>
    %cst_43 = arith.constant dense<0.000000e+00> : vector<16x128xf32>
    %118 = tpu.matmul %116, %117, %cst_43 {dimension_numbers = #tpu.dot_dimension_numbers<[1], [0], [0], [1], [0, 0, 1, 1], [], []>} : vector<16x16xbf16>, vector<16x128xbf16>, vector<16x128xf32> -> vector<16x128xf32>
    %cst_44 = arith.constant 0.000000e+00 : f32
    %119 = vector.broadcast %cst_44 : f32 to vector<16x128xf32>
    %120 = arith.maximumf %118, %119 : vector<16x128xf32>
    %121 = arith.truncf %120 : vector<16x128xf32> to vector<16x128xbf16>
    %cst_45 = arith.constant dense<0.000000e+00> : vector<32x16xf32>
    %122 = tpu.matmul %4, %121, %cst_45 {dimension_numbers = #tpu.dot_dimension_numbers<[1], [1], [0], [0], [0, 0, 1, 0], [], []>} : vector<32x128xbf16>, vector<16x128xbf16>, vector<32x16xf32> -> vector<32x16xf32>
    %123 = vector.broadcast %5 : vector<32x1xf32> to vector<32x16xf32>
    %124 = arith.addf %122, %123 : vector<32x16xf32>
    %125 = arith.addf %91, %124 : vector<32x16xf32>
    %c2_46 = arith.constant 2 : index
    %c0_47 = arith.constant 0 : index
    %c0_48 = arith.constant 0 : index
    %126 = vector.load %arg6[%c2_46, %c0_47, %c0_48] : memref<4x32x16xf32, #tpu.memory_space<vmem>>, vector<1x32x16xf32>
    %127 = vector.shape_cast %126 : vector<1x32x16xf32> to vector<32x16xf32>
    %128 = vector.shape_cast %125 : vector<32x16xf32> to vector<1x32x16xf32>
    tpu.vector_store %arg6[%c2_46, %c0_47, %c0_48], %128 {strides = array<i32>} : memref<4x32x16xf32, #tpu.memory_space<vmem>>, vector<1x32x16xf32>,
    %c3 = arith.constant 3 : index
    %c0_49 = arith.constant 0 : index
    %c0_50 = arith.constant 0 : index
    %129 = vector.load %arg1[%c3, %c0_49, %c0_50] : memref<4x32x16xf32, #tpu.memory_space<vmem>>, vector<1x32x16xf32>
    %130 = vector.shape_cast %129 : vector<1x32x16xf32> to vector<32x16xf32>
    %cst_51 = arith.constant 0.000000e+00 : f32
    %131 = vector.broadcast %cst_51 : f32 to vector<32x16xf32>
    %132 = arith.maximumf %130, %131 : vector<32x16xf32>
    %133 = arith.truncf %132 : vector<32x16xf32> to vector<32x16xbf16>
    %cst_52 = arith.constant dense<0.000000e+00> : vector<16x32xf32>
    %134 = tpu.matmul %11, %133, %cst_52 {dimension_numbers = #tpu.dot_dimension_numbers<[1], [1], [0], [0], [0, 0, 1, 0], [], []>} : vector<16x16xbf16>, vector<32x16xbf16>, vector<16x32xf32> -> vector<16x32xf32>
    %135 = arith.truncf %134 : vector<16x32xf32> to vector<16x32xbf16>
    %cst_53 = arith.constant dense<0.000000e+00> : vector<16x384xf32>
    %136 = tpu.matmul %135, %1, %cst_53 {dimension_numbers = #tpu.dot_dimension_numbers<[1], [0], [0], [1], [0, 0, 1, 1], [], []>} : vector<16x32xbf16>, vector<32x384xbf16>, vector<16x384xf32> -> vector<16x384xf32>
    %137 = vector.broadcast %2 : vector<1x384xf32> to vector<16x384xf32>
    %138 = arith.addf %136, %137 : vector<16x384xf32>
    %139 = vector.extract_strided_slice %138 {offsets = [0, 0], sizes = [16, 128], strides = [1, 1]} : vector<16x384xf32> to vector<16x128xf32>
    %140 = vector.extract_strided_slice %138 {offsets = [0, 128], sizes = [16, 128], strides = [1, 1]} : vector<16x384xf32> to vector<16x128xf32>
    %141 = vector.extract_strided_slice %138 {offsets = [0, 256], sizes = [16, 128], strides = [1, 1]} : vector<16x384xf32> to vector<16x128xf32>
    %142 = arith.truncf %139 : vector<16x128xf32> to vector<16x128xbf16>
    %143 = arith.truncf %140 : vector<16x128xf32> to vector<16x128xbf16>
    %cst_54 = arith.constant dense<0.000000e+00> : vector<16x16xf32>
    %144 = tpu.matmul %142, %143, %cst_54 {dimension_numbers = #tpu.dot_dimension_numbers<[1], [1], [0], [0], [0, 0, 1, 0], [], []>} : vector<16x128xbf16>, vector<16x128xbf16>, vector<16x16xf32> -> vector<16x16xf32>
    %cst_55 = arith.constant dense<0xFF800000> : vector<16xf32>
    %145 = vector.multi_reduction <maximumf>, %144, %cst_55 [1] : vector<16x16xf32> to vector<16xf32>
    %146 = vector.shape_cast %145 : vector<16xf32> to vector<16x1xf32>
    %147 = vector.broadcast %146 : vector<16x1xf32> to vector<16x16xf32>
    %148 = arith.subf %144, %147 : vector<16x16xf32>
    %149 = math.exp %148 : vector<16x16xf32>
    %cst_56 = arith.constant dense<0.000000e+00> : vector<16xf32>
    %150 = vector.multi_reduction <add>, %149, %cst_56 [1] : vector<16x16xf32> to vector<16xf32>
    %151 = vector.shape_cast %150 : vector<16xf32> to vector<16x1xf32>
    %152 = tpu.reciprocal %151 {approx = true} : vector<16x1xf32> -> vector<16x1xf32>
    %153 = vector.broadcast %152 : vector<16x1xf32> to vector<16x16xf32>
    %154 = arith.mulf %149, %153 : vector<16x16xf32>
    %155 = arith.truncf %154 : vector<16x16xf32> to vector<16x16xbf16>
    %156 = arith.truncf %141 : vector<16x128xf32> to vector<16x128xbf16>
    %cst_57 = arith.constant dense<0.000000e+00> : vector<16x128xf32>
    %157 = tpu.matmul %155, %156, %cst_57 {dimension_numbers = #tpu.dot_dimension_numbers<[1], [0], [0], [1], [0, 0, 1, 1], [], []>} : vector<16x16xbf16>, vector<16x128xbf16>, vector<16x128xf32> -> vector<16x128xf32>
    %cst_58 = arith.constant 0.000000e+00 : f32
    %158 = vector.broadcast %cst_58 : f32 to vector<16x128xf32>
    %159 = arith.maximumf %157, %158 : vector<16x128xf32>
    %160 = arith.truncf %159 : vector<16x128xf32> to vector<16x128xbf16>
    %cst_59 = arith.constant dense<0.000000e+00> : vector<32x16xf32>
    %161 = tpu.matmul %4, %160, %cst_59 {dimension_numbers = #tpu.dot_dimension_numbers<[1], [1], [0], [0], [0, 0, 1, 0], [], []>} : vector<32x128xbf16>, vector<16x128xbf16>, vector<32x16xf32> -> vector<32x16xf32>
    %162 = vector.broadcast %5 : vector<32x1xf32> to vector<32x16xf32>
    %163 = arith.addf %161, %162 : vector<32x16xf32>
    %164 = arith.addf %130, %163 : vector<32x16xf32>
    %c3_60 = arith.constant 3 : index
    %c0_61 = arith.constant 0 : index
    %c0_62 = arith.constant 0 : index
    %165 = vector.load %arg6[%c3_60, %c0_61, %c0_62] : memref<4x32x16xf32, #tpu.memory_space<vmem>>, vector<1x32x16xf32>
    %166 = vector.shape_cast %165 : vector<1x32x16xf32> to vector<32x16xf32>
    %167 = vector.shape_cast %164 : vector<32x16xf32> to vector<1x32x16xf32>
    tpu.vector_store %arg6[%c3_60, %c0_61, %c0_62], %167 {strides = array<i32>} : memref<4x32x16xf32, #tpu.memory_space<vmem>>, vector<1x32x16xf32>,
    return
  }
  func.func @transform_0(%arg0: i32) -> (i32, i32, i32) {
    %c0_i32 = arith.constant 0 : i32
    %c0_i32_0 = arith.constant 0 : i32
    %c0_i32_1 = arith.constant 0 : i32
    return %arg0, %c0_i32, %c0_i32_0 : i32, i32, i32
  }
  func.func @transform_1(%arg0: i32) -> (i32, i32) {
    %c0_i32 = arith.constant 0 : i32
    %c0_i32_0 = arith.constant 0 : i32
    %c0_i32_1 = arith.constant 0 : i32
    return %c0_i32, %c0_i32_0 : i32, i32
  }
  func.func @transform_2(%arg0: i32) -> (i32, i32) {
    %c0_i32 = arith.constant 0 : i32
    %c0_i32_0 = arith.constant 0 : i32
    %c0_i32_1 = arith.constant 0 : i32
    return %c0_i32, %c0_i32_0 : i32, i32
  }
  func.func @transform_3(%arg0: i32) -> (i32, i32) {
    %c0_i32 = arith.constant 0 : i32
    %c0_i32_0 = arith.constant 0 : i32
    %c0_i32_1 = arith.constant 0 : i32
    return %c0_i32, %c0_i32_0 : i32, i32
  }
  func.func @transform_4(%arg0: i32) -> (i32, i32) {
    %c0_i32 = arith.constant 0 : i32
    %c0_i32_0 = arith.constant 0 : i32
    %c0_i32_1 = arith.constant 0 : i32
    return %c0_i32, %c0_i32_0 : i32, i32
  }
  func.func @transform_5(%arg0: i32) -> (i32, i32, i32) {
    %c0_i32 = arith.constant 0 : i32
    %c0_i32_0 = arith.constant 0 : i32
    %c0_i32_1 = arith.constant 0 : i32
    return %arg0, %c0_i32, %c0_i32_0 : i32, i32, i32
  }
}

</mosaic_0001>

<llo_original>
// kernel: tpu_custom_call.1
$region0: #{tpu_custom_call.1}
  #allocation0 [shape = 'u32[]', space=smem, size = 0x4, offset = 0x4, fixed_abs, tag = 'smem constant byte address 0x4 - core index']
  #allocation1 [shape = 'u32[144,128]{1,0:T(1,128)}', space=vmem, size = 0x12000, scoped, tag = 'internal scratch']
  %s0 = inlined_call_operand.vmem [shape: f32[4,32,16], index: 0, kind: input, shape index: {}]
  %s1 = inlined_call_operand.vmem [shape: f32[32,384], index: 1, kind: input, shape index: {}]
  %s2 = inlined_call_operand.vmem [shape: f32[1,384], index: 2, kind: input, shape index: {}]
  %s3 = inlined_call_operand.vmem [shape: f32[32,128], index: 3, kind: input, shape index: {}]
  %s4 = inlined_call_operand.vmem [shape: f32[32,1], index: 4, kind: input, shape index: {}]
  %s5 = inlined_call_operand.vmem [shape: f32[4,32,16], index: 5, kind: output, shape index: {}]
  %s6 = sld [smem:[#allocation0]]
  $region30: #{tpu_custom_call.1} parent=0
    _
  %s8 = ssub.s32 1, %s6
  %s9 = scalar_select 0, %s8, %s6
  // Predicated region
  $region2: #{tpu_custom_call.1} parent=0 // pred_check
    _
  $region3: #{tpu_custom_call.1} parent=0 // pred_check_branch
    %11 = sbr.rel (0) target = $region5
  $region4: #{tpu_custom_call.1} parent=0 // pred_region
    _
  $region5: #{tpu_custom_call.1} parent=0 // pred_fallthru
    _
  // Predicated region
  $region6: #{tpu_custom_call.1} parent=0 // pred_check
    _
  $region7: #{tpu_custom_call.1} parent=0 // pred_check_branch
    %13 = sbr.rel (0) target = $region9
  $region8: #{tpu_custom_call.1} parent=0 // pred_region
    _
  $region9: #{tpu_custom_call.1} parent=0 // pred_fallthru
    _
  // Predicated region
  $region10: #{tpu_custom_call.1} parent=0 // pred_check
    _
  $region11: #{tpu_custom_call.1} parent=0 // pred_check_branch
    %15 = sbr.rel (0) target = $region13
  $region12: #{tpu_custom_call.1} parent=0 // pred_region
    _
  $region13: #{tpu_custom_call.1} parent=0 // pred_fallthru
    _
  // Predicated region
  $region14: #{tpu_custom_call.1} parent=0 // pred_check
    _
  $region15: #{tpu_custom_call.1} parent=0 // pred_check_branch
    %17 = sbr.rel (0) target = $region17
  $region16: #{tpu_custom_call.1} parent=0 // pred_region
    _
  $region17: #{tpu_custom_call.1} parent=0 // pred_fallthru
    _
  // Predicated region
  $region18: #{tpu_custom_call.1} parent=0 // pred_check
    _
  $region19: #{tpu_custom_call.1} parent=0 // pred_check_branch
    %19 = sbr.rel (0) target = $region21
  $region20: #{tpu_custom_call.1} parent=0 // pred_region
    _
  $region21: #{tpu_custom_call.1} parent=0 // pred_fallthru
    _
  %v21 = vld [vmem:[%s1] sm:$0xff]
  %v22 = vld [vmem:[%s1 + $0x8] sm:$0xff]
  %v23 = vld [vmem:[%s1 + $0x10] sm:$0xff]
  %v24 = vld [vmem:[%s1 + $0x18] sm:$0xff]
  %v25 = vld [vmem:[%s1 + $0x20] sm:$0xff]
  %v26 = vld [vmem:[%s1 + $0x28] sm:$0xff]
  %v27 = vld [vmem:[%s1 + $0x30] sm:$0xff]
  %v28 = vld [vmem:[%s1 + $0x38] sm:$0xff]
  %v29 = vld [vmem:[%s1 + $0x40] sm:$0xff]
  %v30 = vld [vmem:[%s1 + $0x48] sm:$0xff]
  %v31 = vld [vmem:[%s1 + $0x50] sm:$0xff]
  %v32 = vld [vmem:[%s1 + $0x58] sm:$0xff]
  %v33 = vpack.c.bf16 %v24, %v21
  %v34 = vpack.c.bf16 %v25, %v22
  %v35 = vpack.c.bf16 %v26, %v23
  %v36 = vpack.c.bf16 %v30, %v27
  %v37 = vpack.c.bf16 %v31, %v28
  %v38 = vpack.c.bf16 %v32, %v29
  %v39 = vld [vmem:[%s2] sm:$0x7]
  %v40 = vld [vmem:[%s3] sm:$0xff]
  %v41 = vld [vmem:[%s3 + $0x8] sm:$0xff]
  %v42 = vld [vmem:[%s3 + $0x10] sm:$0xff]
  %v43 = vld [vmem:[%s3 + $0x18] sm:$0xff]
  %v44 = vpack.c.bf16 %v41, %v40
  %v45 = vpack.c.bf16 %v43, %v42
  %v46 = vld [vmem:[%s4] sm:$0xff]
  %v47 = vld [vmem:[%s4 + $0x8] sm:$0xff]
  %v48 = vld [vmem:[%s4 + $0x10] sm:$0xff]
  %v49 = vld [vmem:[%s4 + $0x18] sm:$0xff]
  %v50 = vlaneseq
  %v51 = vshrl.u32 %v50, 7
  %v52 = vadd.s32 %v51, 8
  %v53 = vlaneseq
  %v54 = vand.u32 %v53, 127
  %vm55 = vcmp.eq.s32.totalorder %v51, %v54
  %vm56 = vcmp.eq.s32.totalorder %v52, %v54
  %v57 = vsel %vm55, 1, 0
  %v58 = vsel %vm56, 1, 0
  %v59 = vcvt.s32.f32 %v57
  %v60 = vcvt.s32.f32 %v58
  %v61 = vpack.c.bf16 %v60, %v59
  %v62 = vld [vmem:[%s0] sm:$0xff]
  %v63 = vld [vmem:[%s0 + $0x8] sm:$0xff]
  %v64 = vld [vmem:[%s0 + $0x10] sm:$0xff]
  %v65 = vld [vmem:[%s0 + $0x18] sm:$0xff]
  %v66 = vmax.f32 %v62, 0.0
  %v67 = vmax.f32 %v63, 0.0
  %v68 = vmax.f32 %v64, 0.0
  %v69 = vmax.f32 %v65, 0.0
  %v70 = vpack.c.bf16 %v67, %v66
  %v71 = vpack.c.bf16 %v69, %v68
  %vm72 = vcmask 130048
  %v74 = vsel %vm72, %v61, 0
  %v77 = vsel %vm72, %v70, 0
  %v80 = vsel %vm72, %v71, 0
  %82 = vmatprep.subr.bf16.mxu0 0
  %83 = vmatpush1.bf16.xpose.msra.mxu0 0
  %84 = vmatprep.subr.bf16.mxu0 0
  %85 = vmatpush1.bf16.xpose.msra.mxu0 0
  %86 = vmatprep.subr.bf16.mxu0 0
  %87 = vmatpush1.bf16.xpose.msra.mxu0 0
  %88 = vmatprep.subr.bf16.mxu0 0
  %89 = vmatpush1.bf16.xpose.msra.mxu0 0
  %90 = vmatprep.subr.bf16.mxu0 0
  %91 = vmatpush1.bf16.xpose.msra.mxu0 0
  %92 = vmatprep.subr.bf16.mxu0 0
  %93 = vmatpush1.bf16.xpose.msra.mxu0 0
  %94 = vmatprep.subr.bf16.mxu0 0
  %95 = vmatpush1.bf16.xpose.msra.mxu0 %v80
  %96 = vmatprep.subr.bf16.mxu0 0
  %97 = vmatpush1.bf16.xpose.msra.mxu0 %v77
  %98 = vmatprep.subr.bf16.mxu0 0
  %99 = vmatpush2.bf16.xpose.msra.mxu0 0
  %100 = vmatprep.subr.bf16.mxu0 0
  %101 = vmatpush2.bf16.xpose.msra.mxu0 0
  %102 = vmatprep.subr.bf16.mxu0 0
  %103 = vmatpush2.bf16.xpose.msra.mxu0 0
  %104 = vmatprep.subr.bf16.mxu0 0
  %105 = vmatpush2.bf16.xpose.msra.mxu0 0
  %106 = vmatprep.subr.bf16.mxu0 0
  %107 = vmatpush2.bf16.xpose.msra.mxu0 0
  %108 = vmatprep.subr.bf16.mxu0 0
  %109 = vmatpush2.bf16.xpose.msra.mxu0 0
  %110 = vmatprep.subr.bf16.mxu0 0
  %111 = vmatpush2.bf16.xpose.msra.mxu0 0
  %112 = vmatprep.subr.bf16.mxu0 0
  %113 = vmatpush2.bf16.xpose.msra.mxu0 0
  %114 = vmatprep.mubr.bf16.mxu0 0
  %115 = vmatmul.mubr.bf16.gmra.mxu0 %v74
  %v116 = vpop.f32.mrf.mxu0
  %v117 = vadd.f32 0.0, %v116
  %v118 = vpop.f32.mrf.mxu0
  %v119 = vpop.f32.mrf.mxu0
  %v120 = vadd.f32 0.0, %v119
  %v121 = vpop.f32.mrf.mxu0
  %122 = vdwg.mxu0
  %v123 = vpack.c.bf16 %v120, %v117
  %v125 = vlaneseq
  %v126 = vshrl.u32 %v125, 7
  %v127 = vsub.s32 0, %v126
  %v128 = vrot.slane %v39, %v127
  %v129 = vlaneseq
  %v130 = vshrl.u32 %v129, 7
  %v131 = vsub.s32 1, %v130
  %v132 = vrot.slane %v39, %v131
  %v133 = vlaneseq
  %v134 = vshrl.u32 %v133, 7
  %v135 = vsub.s32 2, %v134
  %v136 = vrot.slane %v39, %v135
  %vm140 = vcmask 261120
  %v142 = vsel %vm140, %v123, 0
  %144 = vmatprep.subr.bf16.mxu0 0
  %145 = vmatpush1.bf16.msra.mxu0 0
  %146 = vmatprep.subr.bf16.mxu0 0
  %147 = vmatpush1.bf16.msra.mxu0 0
  %148 = vmatprep.subr.bf16.mxu0 0
  %149 = vmatpush1.bf16.msra.mxu0 0
  %150 = vmatprep.subr.bf16.mxu0 0
  %151 = vmatpush1.bf16.msra.mxu0 0
  %152 = vmatprep.subr.bf16.mxu0 0
  %153 = vmatpush1.bf16.msra.mxu0 0
  %154 = vmatprep.subr.bf16.mxu0 0
  %155 = vmatpush1.bf16.msra.mxu0 0
  %156 = vmatprep.subr.bf16.mxu0 %v37
  %157 = vmatpush1.bf16.msra.mxu0 %v36
  %158 = vmatprep.subr.bf16.mxu0 %v34
  %159 = vmatpush1.bf16.msra.mxu0 %v33
  %160 = vmatprep.subr.bf16.mxu0 0
  %161 = vmatpush2.bf16.msra.mxu0 0
  %162 = vmatprep.subr.bf16.mxu0 0
  %163 = vmatpush2.bf16.msra.mxu0 0
  %164 = vmatprep.subr.bf16.mxu0 0
  %165 = vmatpush2.bf16.msra.mxu0 0
  %166 = vmatprep.subr.bf16.mxu0 0
  %167 = vmatpush2.bf16.msra.mxu0 0
  %168 = vmatprep.subr.bf16.mxu0 0
  %169 = vmatpush2.bf16.msra.mxu0 0
  %170 = vmatprep.subr.bf16.mxu0 0
  %171 = vmatpush2.bf16.msra.mxu0 0
  %172 = vmatprep.subr.bf16.mxu0 0
  %173 = vmatpush2.bf16.msra.mxu0 0
  %174 = vmatprep.subr.bf16.mxu0 0
  %175 = vmatpush2.bf16.msra.mxu0 0
  %176 = vmatprep.mubr.bf16.mxu0 0
  %177 = vmatmul.mubr.bf16.gmra.mxu0 %v142
  %v178 = vpop.f32.mrf.mxu0
  %v179 = vadd.f32 %v128, %v178
  %v180 = vpop.f32.mrf.mxu0
  %v181 = vadd.f32 %v132, %v180
  %v182 = vpop.f32.mrf.mxu0
  %v183 = vadd.f32 %v128, %v182
  %v184 = vpop.f32.mrf.mxu0
  %v185 = vadd.f32 %v132, %v184
  %186 = vdwg.mxu0
  %187 = vmatprep.subr.bf16.mxu0 0
  %188 = vmatpush1.bf16.msra.mxu0 0
  %189 = vmatprep.subr.bf16.mxu0 0
  %190 = vmatpush1.bf16.msra.mxu0 0
  %191 = vmatprep.subr.bf16.mxu0 0
  %192 = vmatpush1.bf16.msra.mxu0 0
  %193 = vmatprep.subr.bf16.mxu0 0
  %194 = vmatpush1.bf16.msra.mxu0 0
  %195 = vmatprep.subr.bf16.mxu0 0
  %196 = vmatpush1.bf16.msra.mxu0 0
  %197 = vmatprep.subr.bf16.mxu0 0
  %198 = vmatpush1.bf16.msra.mxu0 0
  %199 = vmatprep.subr.bf16.mxu0 0
  %200 = vmatpush1.bf16.msra.mxu0 %v38
  %201 = vmatprep.subr.bf16.mxu0 0
  %202 = vmatpush1.bf16.msra.mxu0 %v35
  %203 = vmatprep.subr.bf16.mxu0 0
  %204 = vmatpush2.bf16.msra.mxu0 0
  %205 = vmatprep.subr.bf16.mxu0 0
  %206 = vmatpush2.bf16.msra.mxu0 0
  %207 = vmatprep.subr.bf16.mxu0 0
  %208 = vmatpush2.bf16.msra.mxu0 0
  %209 = vmatprep.subr.bf16.mxu0 0
  %210 = vmatpush2.bf16.msra.mxu0 0
  %211 = vmatprep.subr.bf16.mxu0 0
  %212 = vmatpush2.bf16.msra.mxu0 0
  %213 = vmatprep.subr.bf16.mxu0 0
  %214 = vmatpush2.bf16.msra.mxu0 0
  %215 = vmatprep.subr.bf16.mxu0 0
  %216 = vmatpush2.bf16.msra.mxu0 0
  %217 = vmatprep.subr.bf16.mxu0 0
  %218 = vmatpush2.bf16.msra.mxu0 0
  %219 = vmatprep.mubr.bf16.mxu0 0
  %220 = vmatmul.mubr.bf16.gmra.mxu0 %v142
  %v221 = vpop.f32.mrf.mxu0
  %v222 = vadd.f32 %v136, %v221
  %v223 = vpop.f32.mrf.mxu0
  %v224 = vpop.f32.mrf.mxu0
  %v225 = vadd.f32 %v136, %v224
  %v226 = vpop.f32.mrf.mxu0
  %227 = vdwg.mxu0
  %v228 = vpack.c.bf16 %v183, %v179
  %v229 = vpack.c.bf16 %v185, %v181
  %230 = vmatprep.subr.bf16.mxu0 0
  %231 = vmatpush1.bf16.xpose.msra.mxu0 0
  %232 = vmatprep.subr.bf16.mxu0 0
  %233 = vmatpush1.bf16.xpose.msra.mxu0 0
  %234 = vmatprep.subr.bf16.mxu0 0
  %235 = vmatpush1.bf16.xpose.msra.mxu0 0
  %236 = vmatprep.subr.bf16.mxu0 0
  %237 = vmatpush1.bf16.xpose.msra.mxu0 0
  %238 = vmatprep.subr.bf16.mxu0 0
  %239 = vmatpush1.bf16.xpose.msra.mxu0 0
  %240 = vmatprep.subr.bf16.mxu0 0
  %241 = vmatpush1.bf16.xpose.msra.mxu0 0
  %242 = vmatprep.subr.bf16.mxu0 0
  %243 = vmatpush1.bf16.xpose.msra.mxu0 0
  %244 = vmatprep.subr.bf16.mxu0 0
  %245 = vmatpush1.bf16.xpose.msra.mxu0 %v229
  %246 = vmatprep.subr.bf16.mxu0 0
  %247 = vmatpush2.bf16.xpose.msra.mxu0 0
  %248 = vmatprep.subr.bf16.mxu0 0
  %249 = vmatpush2.bf16.xpose.msra.mxu0 0
  %250 = vmatprep.subr.bf16.mxu0 0
  %251 = vmatpush2.bf16.xpose.msra.mxu0 0
  %252 = vmatprep.subr.bf16.mxu0 0
  %253 = vmatpush2.bf16.xpose.msra.mxu0 0
  %254 = vmatprep.subr.bf16.mxu0 0
  %255 = vmatpush2.bf16.xpose.msra.mxu0 0
  %256 = vmatprep.subr.bf16.mxu0 0
  %257 = vmatpush2.bf16.xpose.msra.mxu0 0
  %258 = vmatprep.subr.bf16.mxu0 0
  %259 = vmatpush2.bf16.xpose.msra.mxu0 0
  %260 = vmatprep.subr.bf16.mxu0 0
  %261 = vmatpush2.bf16.xpose.msra.mxu0 0
  %262 = vmatprep.mubr.bf16.mxu0 0
  %263 = vmatmul.mubr.bf16.gmra.mxu0 %v228
  %v264 = vpop.f32.mrf.mxu0
  %v265 = vadd.f32 0.0, %v264
  %v266 = vpop.f32.mrf.mxu0
  %v267 = vpop.f32.mrf.mxu0
  %v268 = vadd.f32 0.0, %v267
  %v269 = vpop.f32.mrf.mxu0
  %270 = vdwg.mxu0
  %v271 = vsel %vm72, %v265, -inf
  %272 = vmax.xlane.f32.xlu0 %v271
  %v273 = vpop.xlane.xlu0 %272
  %v274 = vsel %vm72, %v268, -inf
  %275 = vmax.xlane.f32.xlu0 %v274
  %v276 = vpop.xlane.xlu0 %275
  %v277 = vsub.f32 %v265, %v273
  %v278 = vsub.f32 %v268, %v276
  %v279 = vmul.f32 %v277, 1.442695
  %v280 = vpow.pop %v279
  %v281 = vmul.f32 %v278, 1.442695
  %v282 = vpow.pop %v281
  %v283 = vsel %vm72, %v280, 0.0
  %284 = vadd.xlane.f32.xlu0 %v283
  %v285 = vpop.xlane.xlu0 %284
  %v286 = vsel %vm72, %v282, 0.0
  %287 = vadd.xlane.f32.xlu0 %v286
  %v288 = vpop.xlane.xlu0 %287
  %v289 = vrcp.pop %v285
  %v290 = vrcp.pop %v288
  %v291 = vmul.f32 %v280, %v289
  %v292 = vmul.f32 %v282, %v290
  %v293 = vpack.c.bf16 %v292, %v291
  %v294 = vpack.c.bf16 %v225, %v222
  %v296 = vsel %vm72, %v293, 0
  %298 = vmatprep.subr.bf16.mxu0 0
  %299 = vmatpush1.bf16.msra.mxu0 0
  %300 = vmatprep.subr.bf16.mxu0 0
  %301 = vmatpush1.bf16.msra.mxu0 0
  %302 = vmatprep.subr.bf16.mxu0 0
  %303 = vmatpush1.bf16.msra.mxu0 0
  %304 = vmatprep.subr.bf16.mxu0 0
  %305 = vmatpush1.bf16.msra.mxu0 0
  %306 = vmatprep.subr.bf16.mxu0 0
  %307 = vmatpush1.bf16.msra.mxu0 0
  %308 = vmatprep.subr.bf16.mxu0 0
  %309 = vmatpush1.bf16.msra.mxu0 0
  %310 = vmatprep.subr.bf16.mxu0 0
  %311 = vmatpush1.bf16.msra.mxu0 0
  %312 = vmatprep.subr.bf16.mxu0 0
  %313 = vmatpush1.bf16.msra.mxu0 %v294
  %314 = vmatprep.subr.bf16.mxu0 0
  %315 = vmatpush2.bf16.msra.mxu0 0
  %316 = vmatprep.subr.bf16.mxu0 0
  %317 = vmatpush2.bf16.msra.mxu0 0
  %318 = vmatprep.subr.bf16.mxu0 0
  %319 = vmatpush2.bf16.msra.mxu0 0
  %320 = vmatprep.subr.bf16.mxu0 0
  %321 = vmatpush2.bf16.msra.mxu0 0
  %322 = vmatprep.subr.bf16.mxu0 0
  %323 = vmatpush2.bf16.msra.mxu0 0
  %324 = vmatprep.subr.bf16.mxu0 0
  %325 = vmatpush2.bf16.msra.mxu0 0
  %326 = vmatprep.subr.bf16.mxu0 0
  %327 = vmatpush2.bf16.msra.mxu0 0
  %328 = vmatprep.subr.bf16.mxu0 0
  %329 = vmatpush2.bf16.msra.mxu0 0
  %330 = vmatprep.mubr.bf16.mxu0 0
  %331 = vmatmul.mubr.bf16.gmra.mxu0 %v296
  %v332 = vpop.f32.mrf.mxu0
  %v333 = vadd.f32 0.0, %v332
  %v334 = vpop.f32.mrf.mxu0
  %v335 = vpop.f32.mrf.mxu0
  %v336 = vadd.f32 0.0, %v335
  %v337 = vpop.f32.mrf.mxu0
  %338 = vdwg.mxu0
  %v339 = vmax.f32 %v333, 0.0
  %v340 = vmax.f32 %v336, 0.0
  %v341 = vpack.c.bf16 %v340, %v339
  %343 = vset.pattern.permute.xlu0 0
  %344 = vperm.xlu0 %343, %v46
  %v345 = vpop.permute.xlu0 %344
  %348 = vset.pattern.permute.xlu0 0
  %349 = vperm.xlu0 %348, %v47
  %v350 = vpop.permute.xlu0 %349
  %353 = vset.pattern.permute.xlu0 0
  %354 = vperm.xlu0 %353, %v48
  %v355 = vpop.permute.xlu0 %354
  %358 = vset.pattern.permute.xlu0 0
  %359 = vperm.xlu0 %358, %v49
  %v360 = vpop.permute.xlu0 %359
  %362 = vmatprep.subr.bf16.mxu0 0
  %363 = vmatpush1.bf16.xpose.msra.mxu0 0
  %364 = vmatprep.subr.bf16.mxu0 0
  %365 = vmatpush1.bf16.xpose.msra.mxu0 0
  %366 = vmatprep.subr.bf16.mxu0 0
  %367 = vmatpush1.bf16.xpose.msra.mxu0 0
  %368 = vmatprep.subr.bf16.mxu0 0
  %369 = vmatpush1.bf16.xpose.msra.mxu0 0
  %370 = vmatprep.subr.bf16.mxu0 0
  %371 = vmatpush1.bf16.xpose.msra.mxu0 0
  %372 = vmatprep.subr.bf16.mxu0 0
  %373 = vmatpush1.bf16.xpose.msra.mxu0 0
  %374 = vmatprep.subr.bf16.mxu0 0
  %375 = vmatpush1.bf16.xpose.msra.mxu0 0
  %376 = vmatprep.subr.bf16.mxu0 0
  %377 = vmatpush1.bf16.xpose.msra.mxu0 %v341
  %378 = vmatprep.subr.bf16.mxu0 0
  %379 = vmatpush2.bf16.xpose.msra.mxu0 0
  %380 = vmatprep.subr.bf16.mxu0 0
  %381 = vmatpush2.bf16.xpose.msra.mxu0 0
  %382 = vmatprep.subr.bf16.mxu0 0
  %383 = vmatpush2.bf16.xpose.msra.mxu0 0
  %384 = vmatprep.subr.bf16.mxu0 0
  %385 = vmatpush2.bf16.xpose.msra.mxu0 0
  %386 = vmatprep.subr.bf16.mxu0 0
  %387 = vmatpush2.bf16.xpose.msra.mxu0 0
  %388 = vmatprep.subr.bf16.mxu0 0
  %389 = vmatpush2.bf16.xpose.msra.mxu0 0
  %390 = vmatprep.subr.bf16.mxu0 0
  %391 = vmatpush2.bf16.xpose.msra.mxu0 0
  %392 = vmatprep.subr.bf16.mxu0 0
  %393 = vmatpush2.bf16.xpose.msra.mxu0 0
  %394 = vmatprep.mubr.bf16.mxu0 0
  %395 = vmatmul.mubr.bf16.gmra.mxu0 %v44
  %v396 = vpop.f32.mrf.mxu0
  %v397 = vadd.f32 %v345, %v396
  %v398 = vpop.f32.mrf.mxu0
  %v399 = vpop.f32.mrf.mxu0
  %v400 = vadd.f32 %v350, %v399
  %v401 = vpop.f32.mrf.mxu0
  %402 = vmatprep.mubr.bf16.mxu0 0
  %403 = vmatmul.mubr.bf16.gmra.mxu0 %v45
  %v404 = vpop.f32.mrf.mxu0
  %v405 = vadd.f32 %v355, %v404
  %v406 = vpop.f32.mrf.mxu0
  %v407 = vpop.f32.mrf.mxu0
  %v408 = vadd.f32 %v360, %v407
  %v409 = vpop.f32.mrf.mxu0
  %410 = vdwg.mxu0
  %v411 = vadd.f32 %v62, %v397
  %v412 = vadd.f32 %v63, %v400
  %v413 = vadd.f32 %v64, %v405
  %v414 = vadd.f32 %v65, %v408
  %415 = vst.msk [vmem:[%s5] sm:$0xff] %vm72, %v411
  %416 = vst.msk [vmem:[%s5 + $0x8] sm:$0xff] %vm72, %v412
  %417 = vst.msk [vmem:[%s5 + $0x10] sm:$0xff] %vm72, %v413
  %418 = vst.msk [vmem:[%s5 + $0x18] sm:$0xff] %vm72, %v414
  %s419 = scalar_lea.vmem %s0, 32
  %v420 = vld [vmem:[%s419] sm:$0xff]
  %v421 = vld [vmem:[%s419 + $0x8] sm:$0xff]
  %v422 = vld [vmem:[%s419 + $0x10] sm:$0xff]
  %v423 = vld [vmem:[%s419 + $0x18] sm:$0xff]
  %v424 = vmax.f32 %v420, 0.0
  %v425 = vmax.f32 %v421, 0.0
  %v426 = vmax.f32 %v422, 0.0
  %v427 = vmax.f32 %v423, 0.0
  %v428 = vpack.c.bf16 %v425, %v424
  %v429 = vpack.c.bf16 %v427, %v426
  %v431 = vsel %vm72, %v428, 0
  %v434 = vsel %vm72, %v429, 0
  %436 = vmatprep.subr.bf16.mxu0 0
  %437 = vmatpush1.bf16.xpose.msra.mxu0 0
  %438 = vmatprep.subr.bf16.mxu0 0
  %439 = vmatpush1.bf16.xpose.msra.mxu0 0
  %440 = vmatprep.subr.bf16.mxu0 0
  %441 = vmatpush1.bf16.xpose.msra.mxu0 0
  %442 = vmatprep.subr.bf16.mxu0 0
  %443 = vmatpush1.bf16.xpose.msra.mxu0 0
  %444 = vmatprep.subr.bf16.mxu0 0
  %445 = vmatpush1.bf16.xpose.msra.mxu0 0
  %446 = vmatprep.subr.bf16.mxu0 0
  %447 = vmatpush1.bf16.xpose.msra.mxu0 0
  %448 = vmatprep.subr.bf16.mxu0 0
  %449 = vmatpush1.bf16.xpose.msra.mxu0 %v434
  %450 = vmatprep.subr.bf16.mxu0 0
  %451 = vmatpush1.bf16.xpose.msra.mxu0 %v431
  %452 = vmatprep.subr.bf16.mxu0 0
  %453 = vmatpush2.bf16.xpose.msra.mxu0 0
  %454 = vmatprep.subr.bf16.mxu0 0
  %455 = vmatpush2.bf16.xpose.msra.mxu0 0
  %456 = vmatprep.subr.bf16.mxu0 0
  %457 = vmatpush2.bf16.xpose.msra.mxu0 0
  %458 = vmatprep.subr.bf16.mxu0 0
  %459 = vmatpush2.bf16.xpose.msra.mxu0 0
  %460 = vmatprep.subr.bf16.mxu0 0
  %461 = vmatpush2.bf16.xpose.msra.mxu0 0
  %462 = vmatprep.subr.bf16.mxu0 0
  %463 = vmatpush2.bf16.xpose.msra.mxu0 0
  %464 = vmatprep.subr.bf16.mxu0 0
  %465 = vmatpush2.bf16.xpose.msra.mxu0 0
  %466 = vmatprep.subr.bf16.mxu0 0
  %467 = vmatpush2.bf16.xpose.msra.mxu0 0
  %468 = vmatprep.mubr.bf16.mxu0 0
  %469 = vmatmul.mubr.bf16.gmra.mxu0 %v74
  %v470 = vpop.f32.mrf.mxu0
  %v471 = vadd.f32 0.0, %v470
  %v472 = vpop.f32.mrf.mxu0
  %v473 = vpop.f32.mrf.mxu0
  %v474 = vadd.f32 0.0, %v473
  %v475 = vpop.f32.mrf.mxu0
  %476 = vdwg.mxu0
  %v477 = vpack.c.bf16 %v474, %v471
  %v479 = vsel %vm140, %v477, 0
  %481 = vmatprep.subr.bf16.mxu0 0
  %482 = vmatpush1.bf16.msra.mxu0 0
  %483 = vmatprep.subr.bf16.mxu0 0
  %484 = vmatpush1.bf16.msra.mxu0 0
  %485 = vmatprep.subr.bf16.mxu0 0
  %486 = vmatpush1.bf16.msra.mxu0 0
  %487 = vmatprep.subr.bf16.mxu0 0
  %488 = vmatpush1.bf16.msra.mxu0 0
  %489 = vmatprep.subr.bf16.mxu0 0
  %490 = vmatpush1.bf16.msra.mxu0 0
  %491 = vmatprep.subr.bf16.mxu0 0
  %492 = vmatpush1.bf16.msra.mxu0 0
  %493 = vmatprep.subr.bf16.mxu0 %v37
  %494 = vmatpush1.bf16.msra.mxu0 %v36
  %495 = vmatprep.subr.bf16.mxu0 %v34
  %496 = vmatpush1.bf16.msra.mxu0 %v33
  %497 = vmatprep.subr.bf16.mxu0 0
  %498 = vmatpush2.bf16.msra.mxu0 0
  %499 = vmatprep.subr.bf16.mxu0 0
  %500 = vmatpush2.bf16.msra.mxu0 0
  %501 = vmatprep.subr.bf16.mxu0 0
  %502 = vmatpush2.bf16.msra.mxu0 0
  %503 = vmatprep.subr.bf16.mxu0 0
  %504 = vmatpush2.bf16.msra.mxu0 0
  %505 = vmatprep.subr.bf16.mxu0 0
  %506 = vmatpush2.bf16.msra.mxu0 0
  %507 = vmatprep.subr.bf16.mxu0 0
  %508 = vmatpush2.bf16.msra.mxu0 0
  %509 = vmatprep.subr.bf16.mxu0 0
  %510 = vmatpush2.bf16.msra.mxu0 0
  %511 = vmatprep.subr.bf16.mxu0 0
  %512 = vmatpush2.bf16.msra.mxu0 0
  %513 = vmatprep.mubr.bf16.mxu0 0
  %514 = vmatmul.mubr.bf16.gmra.mxu0 %v479
  %v515 = vpop.f32.mrf.mxu0
  %v516 = vadd.f32 %v128, %v515
  %v517 = vpop.f32.mrf.mxu0
  %v518 = vadd.f32 %v132, %v517
  %v519 = vpop.f32.mrf.mxu0
  %v520 = vadd.f32 %v128, %v519
  %v521 = vpop.f32.mrf.mxu0
  %v522 = vadd.f32 %v132, %v521
  %523 = vdwg.mxu0
  %524 = vmatprep.subr.bf16.mxu0 0
  %525 = vmatpush1.bf16.msra.mxu0 0
  %526 = vmatprep.subr.bf16.mxu0 0
  %527 = vmatpush1.bf16.msra.mxu0 0
  %528 = vmatprep.subr.bf16.mxu0 0
  %529 = vmatpush1.bf16.msra.mxu0 0
  %530 = vmatprep.subr.bf16.mxu0 0
  %531 = vmatpush1.bf16.msra.mxu0 0
  %532 = vmatprep.subr.bf16.mxu0 0
  %533 = vmatpush1.bf16.msra.mxu0 0
  %534 = vmatprep.subr.bf16.mxu0 0
  %535 = vmatpush1.bf16.msra.mxu0 0
  %536 = vmatprep.subr.bf16.mxu0 0
  %537 = vmatpush1.bf16.msra.mxu0 %v38
  %538 = vmatprep.subr.bf16.mxu0 0
  %539 = vmatpush1.bf16.msra.mxu0 %v35
  %540 = vmatprep.subr.bf16.mxu0 0
  %541 = vmatpush2.bf16.msra.mxu0 0
  %542 = vmatprep.subr.bf16.mxu0 0
  %543 = vmatpush2.bf16.msra.mxu0 0
  %544 = vmatprep.subr.bf16.mxu0 0
  %545 = vmatpush2.bf16.msra.mxu0 0
  %546 = vmatprep.subr.bf16.mxu0 0
  %547 = vmatpush2.bf16.msra.mxu0 0
  %548 = vmatprep.subr.bf16.mxu0 0
  %549 = vmatpush2.bf16.msra.mxu0 0
  %550 = vmatprep.subr.bf16.mxu0 0
  %551 = vmatpush2.bf16.msra.mxu0 0
  %552 = vmatprep.subr.bf16.mxu0 0
  %553 = vmatpush2.bf16.msra.mxu0 0
  %554 = vmatprep.subr.bf16.mxu0 0
  %555 = vmatpush2.bf16.msra.mxu0 0
  %556 = vmatprep.mubr.bf16.mxu0 0
  %557 = vmatmul.mubr.bf16.gmra.mxu0 %v479
  %v558 = vpop.f32.mrf.mxu0
  %v559 = vadd.f32 %v136, %v558
  %v560 = vpop.f32.mrf.mxu0
  %v561 = vpop.f32.mrf.mxu0
  %v562 = vadd.f32 %v136, %v561
  %v563 = vpop.f32.mrf.mxu0
  %564 = vdwg.mxu0
  %v565 = vpack.c.bf16 %v520, %v516
  %v566 = vpack.c.bf16 %v522, %v518
  %567 = vmatprep.subr.bf16.mxu0 0
  %568 = vmatpush1.bf16.xpose.msra.mxu0 0
  %569 = vmatprep.subr.bf16.mxu0 0
  %570 = vmatpush1.bf16.xpose.msra.mxu0 0
  %571 = vmatprep.subr.bf16.mxu0 0
  %572 = vmatpush1.bf16.xpose.msra.mxu0 0
  %573 = vmatprep.subr.bf16.mxu0 0
  %574 = vmatpush1.bf16.xpose.msra.mxu0 0
  %575 = vmatprep.subr.bf16.mxu0 0
  %576 = vmatpush1.bf16.xpose.msra.mxu0 0
  %577 = vmatprep.subr.bf16.mxu0 0
  %578 = vmatpush1.bf16.xpose.msra.mxu0 0
  %579 = vmatprep.subr.bf16.mxu0 0
  %580 = vmatpush1.bf16.xpose.msra.mxu0 0
  %581 = vmatprep.subr.bf16.mxu0 0
  %582 = vmatpush1.bf16.xpose.msra.mxu0 %v566
  %583 = vmatprep.subr.bf16.mxu0 0
  %584 = vmatpush2.bf16.xpose.msra.mxu0 0
  %585 = vmatprep.subr.bf16.mxu0 0
  %586 = vmatpush2.bf16.xpose.msra.mxu0 0
  %587 = vmatprep.subr.bf16.mxu0 0
  %588 = vmatpush2.bf16.xpose.msra.mxu0 0
  %589 = vmatprep.subr.bf16.mxu0 0
  %590 = vmatpush2.bf16.xpose.msra.mxu0 0
  %591 = vmatprep.subr.bf16.mxu0 0
  %592 = vmatpush2.bf16.xpose.msra.mxu0 0
  %593 = vmatprep.subr.bf16.mxu0 0
  %594 = vmatpush2.bf16.xpose.msra.mxu0 0
  %595 = vmatprep.subr.bf16.mxu0 0
  %596 = vmatpush2.bf16.xpose.msra.mxu0 0
  %597 = vmatprep.subr.bf16.mxu0 0
  %598 = vmatpush2.bf16.xpose.msra.mxu0 0
  %599 = vmatprep.mubr.bf16.mxu0 0
  %600 = vmatmul.mubr.bf16.gmra.mxu0 %v565
  %v601 = vpop.f32.mrf.mxu0
  %v602 = vadd.f32 0.0, %v601
  %v603 = vpop.f32.mrf.mxu0
  %v604 = vpop.f32.mrf.mxu0
  %v605 = vadd.f32 0.0, %v604
  %v606 = vpop.f32.mrf.mxu0
  %607 = vdwg.mxu0
  %v608 = vsel %vm72, %v602, -inf
  %609 = vmax.xlane.f32.xlu0 %v608
  %v610 = vpop.xlane.xlu0 %609
  %v611 = vsel %vm72, %v605, -inf
  %612 = vmax.xlane.f32.xlu0 %v611
  %v613 = vpop.xlane.xlu0 %612
  %v614 = vsub.f32 %v602, %v610
  %v615 = vsub.f32 %v605, %v613
  %v616 = vmul.f32 %v614, 1.442695
  %v617 = vpow.pop %v616
  %v618 = vmul.f32 %v615, 1.442695
  %v619 = vpow.pop %v618
  %v620 = vsel %vm72, %v617, 0.0
  %621 = vadd.xlane.f32.xlu0 %v620
  %v622 = vpop.xlane.xlu0 %621
  %v623 = vsel %vm72, %v619, 0.0
  %624 = vadd.xlane.f32.xlu0 %v623
  %v625 = vpop.xlane.xlu0 %624
  %v626 = vrcp.pop %v622
  %v627 = vrcp.pop %v625
  %v628 = vmul.f32 %v617, %v626
  %v629 = vmul.f32 %v619, %v627
  %v630 = vpack.c.bf16 %v629, %v628
  %v631 = vpack.c.bf16 %v562, %v559
  %v633 = vsel %vm72, %v630, 0
  %635 = vmatprep.subr.bf16.mxu0 0
  %636 = vmatpush1.bf16.msra.mxu0 0
  %637 = vmatprep.subr.bf16.mxu0 0
  %638 = vmatpush1.bf16.msra.mxu0 0
  %639 = vmatprep.subr.bf16.mxu0 0
  %640 = vmatpush1.bf16.msra.mxu0 0
  %641 = vmatprep.subr.bf16.mxu0 0
  %642 = vmatpush1.bf16.msra.mxu0 0
  %643 = vmatprep.subr.bf16.mxu0 0
  %644 = vmatpush1.bf16.msra.mxu0 0
  %645 = vmatprep.subr.bf16.mxu0 0
  %646 = vmatpush1.bf16.msra.mxu0 0
  %647 = vmatprep.subr.bf16.mxu0 0
  %648 = vmatpush1.bf16.msra.mxu0 0
  %649 = vmatprep.subr.bf16.mxu0 0
  %650 = vmatpush1.bf16.msra.mxu0 %v631
  %651 = vmatprep.subr.bf16.mxu0 0
  %652 = vmatpush2.bf16.msra.mxu0 0
  %653 = vmatprep.subr.bf16.mxu0 0
  %654 = vmatpush2.bf16.msra.mxu0 0
  %655 = vmatprep.subr.bf16.mxu0 0
  %656 = vmatpush2.bf16.msra.mxu0 0
  %657 = vmatprep.subr.bf16.mxu0 0
  %658 = vmatpush2.bf16.msra.mxu0 0
  %659 = vmatprep.subr.bf16.mxu0 0
  %660 = vmatpush2.bf16.msra.mxu0 0
  %661 = vmatprep.subr.bf16.mxu0 0
  %662 = vmatpush2.bf16.msra.mxu0 0
  %663 = vmatprep.subr.bf16.mxu0 0
  %664 = vmatpush2.bf16.msra.mxu0 0
  %665 = vmatprep.subr.bf16.mxu0 0
  %666 = vmatpush2.bf16.msra.mxu0 0
  %667 = vmatprep.mubr.bf16.mxu0 0
  %668 = vmatmul.mubr.bf16.gmra.mxu0 %v633
  %v669 = vpop.f32.mrf.mxu0
  %v670 = vadd.f32 0.0, %v669
  %v671 = vpop.f32.mrf.mxu0
  %v672 = vpop.f32.mrf.mxu0
  %v673 = vadd.f32 0.0, %v672
  %v674 = vpop.f32.mrf.mxu0
  %675 = vdwg.mxu0
  %v676 = vmax.f32 %v670, 0.0
  %v677 = vmax.f32 %v673, 0.0
  %v678 = vpack.c.bf16 %v677, %v676
  %679 = vmatprep.subr.bf16.mxu0 0
  %680 = vmatpush1.bf16.xpose.msra.mxu0 0
  %681 = vmatprep.subr.bf16.mxu0 0
  %682 = vmatpush1.bf16.xpose.msra.mxu0 0
  %683 = vmatprep.subr.bf16.mxu0 0
  %684 = vmatpush1.bf16.xpose.msra.mxu0 0
  %685 = vmatprep.subr.bf16.mxu0 0
  %686 = vmatpush1.bf16.xpose.msra.mxu0 0
  %687 = vmatprep.subr.bf16.mxu0 0
  %688 = vmatpush1.bf16.xpose.msra.mxu0 0
  %689 = vmatprep.subr.bf16.mxu0 0
  %690 = vmatpush1.bf16.xpose.msra.mxu0 0
  %691 = vmatprep.subr.bf16.mxu0 0
  %692 = vmatpush1.bf16.xpose.msra.mxu0 0
  %693 = vmatprep.subr.bf16.mxu0 0
  %694 = vmatpush1.bf16.xpose.msra.mxu0 %v678
  %695 = vmatprep.subr.bf16.mxu0 0
  %696 = vmatpush2.bf16.xpose.msra.mxu0 0
  %697 = vmatprep.subr.bf16.mxu0 0
  %698 = vmatpush2.bf16.xpose.msra.mxu0 0
  %699 = vmatprep.subr.bf16.mxu0 0
  %700 = vmatpush2.bf16.xpose.msra.mxu0 0
  %701 = vmatprep.subr.bf16.mxu0 0
  %702 = vmatpush2.bf16.xpose.msra.mxu0 0
  %703 = vmatprep.subr.bf16.mxu0 0
  %704 = vmatpush2.bf16.xpose.msra.mxu0 0
  %705 = vmatprep.subr.bf16.mxu0 0
  %706 = vmatpush2.bf16.xpose.msra.mxu0 0
  %707 = vmatprep.subr.bf16.mxu0 0
  %708 = vmatpush2.bf16.xpose.msra.mxu0 0
  %709 = vmatprep.subr.bf16.mxu0 0
  %710 = vmatpush2.bf16.xpose.msra.mxu0 0
  %711 = vmatprep.mubr.bf16.mxu0 0
  %712 = vmatmul.mubr.bf16.gmra.mxu0 %v44
  %v713 = vpop.f32.mrf.mxu0
  %v714 = vadd.f32 %v345, %v713
  %v715 = vpop.f32.mrf.mxu0
  %v716 = vpop.f32.mrf.mxu0
  %v717 = vadd.f32 %v350, %v716
  %v718 = vpop.f32.mrf.mxu0
  %719 = vmatprep.mubr.bf16.mxu0 0
  %720 = vmatmul.mubr.bf16.gmra.mxu0 %v45
  %v721 = vpop.f32.mrf.mxu0
  %v722 = vadd.f32 %v355, %v721
  %v723 = vpop.f32.mrf.mxu0
  %v724 = vpop.f32.mrf.mxu0
  %v725 = vadd.f32 %v360, %v724
  %v726 = vpop.f32.mrf.mxu0
  %727 = vdwg.mxu0
  %v728 = vadd.f32 %v420, %v714
  %v729 = vadd.f32 %v421, %v717
  %v730 = vadd.f32 %v422, %v722
  %v731 = vadd.f32 %v423, %v725
  %s732 = scalar_lea.vmem %s5, 32
  %733 = vst.msk [vmem:[%s732] sm:$0xff] %vm72, %v728
  %734 = vst.msk [vmem:[%s732 + $0x8] sm:$0xff] %vm72, %v729
  %735 = vst.msk [vmem:[%s732 + $0x10] sm:$0xff] %vm72, %v730
  %736 = vst.msk [vmem:[%s732 + $0x18] sm:$0xff] %vm72, %v731
  %s737 = scalar_lea.vmem %s0, 64
  %v738 = vld [vmem:[%s737] sm:$0xff]
  %v739 = vld [vmem:[%s737 + $0x8] sm:$0xff]
  %v740 = vld [vmem:[%s737 + $0x10] sm:$0xff]
  %v741 = vld [vmem:[%s737 + $0x18] sm:$0xff]
  %v742 = vmax.f32 %v738, 0.0
  %v743 = vmax.f32 %v739, 0.0
  %v744 = vmax.f32 %v740, 0.0
  %v745 = vmax.f32 %v741, 0.0
  %v746 = vpack.c.bf16 %v743, %v742
  %v747 = vpack.c.bf16 %v745, %v744
  %v749 = vsel %vm72, %v746, 0
  %v752 = vsel %vm72, %v747, 0
  %754 = vmatprep.subr.bf16.mxu0 0
  %755 = vmatpush1.bf16.xpose.msra.mxu0 0
  %756 = vmatprep.subr.bf16.mxu0 0
  %757 = vmatpush1.bf16.xpose.msra.mxu0 0
  %758 = vmatprep.subr.bf16.mxu0 0
  %759 = vmatpush1.bf16.xpose.msra.mxu0 0
  %760 = vmatprep.subr.bf16.mxu0 0
  %761 = vmatpush1.bf16.xpose.msra.mxu0 0
  %762 = vmatprep.subr.bf16.mxu0 0
  %763 = vmatpush1.bf16.xpose.msra.mxu0 0
  %764 = vmatprep.subr.bf16.mxu0 0
  %765 = vmatpush1.bf16.xpose.msra.mxu0 0
  %766 = vmatprep.subr.bf16.mxu0 0
  %767 = vmatpush1.bf16.xpose.msra.mxu0 %v752
  %768 = vmatprep.subr.bf16.mxu0 0
  %769 = vmatpush1.bf16.xpose.msra.mxu0 %v749
  %770 = vmatprep.subr.bf16.mxu0 0
  %771 = vmatpush2.bf16.xpose.msra.mxu0 0
  %772 = vmatprep.subr.bf16.mxu0 0
  %773 = vmatpush2.bf16.xpose.msra.mxu0 0
  %774 = vmatprep.subr.bf16.mxu0 0
  %775 = vmatpush2.bf16.xpose.msra.mxu0 0
  %776 = vmatprep.subr.bf16.mxu0 0
  %777 = vmatpush2.bf16.xpose.msra.mxu0 0
  %778 = vmatprep.subr.bf16.mxu0 0
  %779 = vmatpush2.bf16.xpose.msra.mxu0 0
  %780 = vmatprep.subr.bf16.mxu0 0
  %781 = vmatpush2.bf16.xpose.msra.mxu0 0
  %782 = vmatprep.subr.bf16.mxu0 0
  %783 = vmatpush2.bf16.xpose.msra.mxu0 0
  %784 = vmatprep.subr.bf16.mxu0 0
  %785 = vmatpush2.bf16.xpose.msra.mxu0 0
  %786 = vmatprep.mubr.bf16.mxu0 0
  %787 = vmatmul.mubr.bf16.gmra.mxu0 %v74
  %v788 = vpop.f32.mrf.mxu0
  %v789 = vadd.f32 0.0, %v788
  %v790 = vpop.f32.mrf.mxu0
  %v791 = vpop.f32.mrf.mxu0
  %v792 = vadd.f32 0.0, %v791
  %v793 = vpop.f32.mrf.mxu0
  %794 = vdwg.mxu0
  %v795 = vpack.c.bf16 %v792, %v789
  %v797 = vsel %vm140, %v795, 0
  %799 = vmatprep.subr.bf16.mxu0 0
  %800 = vmatpush1.bf16.msra.mxu0 0
  %801 = vmatprep.subr.bf16.mxu0 0
  %802 = vmatpush1.bf16.msra.mxu0 0
  %803 = vmatprep.subr.bf16.mxu0 0
  %804 = vmatpush1.bf16.msra.mxu0 0
  %805 = vmatprep.subr.bf16.mxu0 0
  %806 = vmatpush1.bf16.msra.mxu0 0
  %807 = vmatprep.subr.bf16.mxu0 0
  %808 = vmatpush1.bf16.msra.mxu0 0
  %809 = vmatprep.subr.bf16.mxu0 0
  %810 = vmatpush1.bf16.msra.mxu0 0
  %811 = vmatprep.subr.bf16.mxu0 %v37
  %812 = vmatpush1.bf16.msra.mxu0 %v36
  %813 = vmatprep.subr.bf16.mxu0 %v34
  %814 = vmatpush1.bf16.msra.mxu0 %v33
  %815 = vmatprep.subr.bf16.mxu0 0
  %816 = vmatpush2.bf16.msra.mxu0 0
  %817 = vmatprep.subr.bf16.mxu0 0
  %818 = vmatpush2.bf16.msra.mxu0 0
  %819 = vmatprep.subr.bf16.mxu0 0
  %820 = vmatpush2.bf16.msra.mxu0 0
  %821 = vmatprep.subr.bf16.mxu0 0
  %822 = vmatpush2.bf16.msra.mxu0 0
  %823 = vmatprep.subr.bf16.mxu0 0
  %824 = vmatpush2.bf16.msra.mxu0 0
  %825 = vmatprep.subr.bf16.mxu0 0
  %826 = vmatpush2.bf16.msra.mxu0 0
  %827 = vmatprep.subr.bf16.mxu0 0
  %828 = vmatpush2.bf16.msra.mxu0 0
  %829 = vmatprep.subr.bf16.mxu0 0
  %830 = vmatpush2.bf16.msra.mxu0 0
  %831 = vmatprep.mubr.bf16.mxu0 0
  %832 = vmatmul.mubr.bf16.gmra.mxu0 %v797
  %v833 = vpop.f32.mrf.mxu0
  %v834 = vadd.f32 %v128, %v833
  %v835 = vpop.f32.mrf.mxu0
  %v836 = vadd.f32 %v132, %v835
  %v837 = vpop.f32.mrf.mxu0
  %v838 = vadd.f32 %v128, %v837
  %v839 = vpop.f32.mrf.mxu0
  %v840 = vadd.f32 %v132, %v839
  %841 = vdwg.mxu0
  %842 = vmatprep.subr.bf16.mxu0 0
  %843 = vmatpush1.bf16.msra.mxu0 0
  %844 = vmatprep.subr.bf16.mxu0 0
  %845 = vmatpush1.bf16.msra.mxu0 0
  %846 = vmatprep.subr.bf16.mxu0 0
  %847 = vmatpush1.bf16.msra.mxu0 0
  %848 = vmatprep.subr.bf16.mxu0 0
  %849 = vmatpush1.bf16.msra.mxu0 0
  %850 = vmatprep.subr.bf16.mxu0 0
  %851 = vmatpush1.bf16.msra.mxu0 0
  %852 = vmatprep.subr.bf16.mxu0 0
  %853 = vmatpush1.bf16.msra.mxu0 0
  %854 = vmatprep.subr.bf16.mxu0 0
  %855 = vmatpush1.bf16.msra.mxu0 %v38
  %856 = vmatprep.subr.bf16.mxu0 0
  %857 = vmatpush1.bf16.msra.mxu0 %v35
  %858 = vmatprep.subr.bf16.mxu0 0
  %859 = vmatpush2.bf16.msra.mxu0 0
  %860 = vmatprep.subr.bf16.mxu0 0
  %861 = vmatpush2.bf16.msra.mxu0 0
  %862 = vmatprep.subr.bf16.mxu0 0
  %863 = vmatpush2.bf16.msra.mxu0 0
  %864 = vmatprep.subr.bf16.mxu0 0
  %865 = vmatpush2.bf16.msra.mxu0 0
  %866 = vmatprep.subr.bf16.mxu0 0
  %867 = vmatpush2.bf16.msra.mxu0 0
  %868 = vmatprep.subr.bf16.mxu0 0
  %869 = vmatpush2.bf16.msra.mxu0 0
  %870 = vmatprep.subr.bf16.mxu0 0
  %871 = vmatpush2.bf16.msra.mxu0 0
  %872 = vmatprep.subr.bf16.mxu0 0
  %873 = vmatpush2.bf16.msra.mxu0 0
  %874 = vmatprep.mubr.bf16.mxu0 0
  %875 = vmatmul.mubr.bf16.gmra.mxu0 %v797
  %v876 = vpop.f32.mrf.mxu0
  %v877 = vadd.f32 %v136, %v876
  %v878 = vpop.f32.mrf.mxu0
  %v879 = vpop.f32.mrf.mxu0
  %v880 = vadd.f32 %v136, %v879
  %v881 = vpop.f32.mrf.mxu0
  %882 = vdwg.mxu0
  %v883 = vpack.c.bf16 %v838, %v834
  %v884 = vpack.c.bf16 %v840, %v836
  %885 = vmatprep.subr.bf16.mxu0 0
  %886 = vmatpush1.bf16.xpose.msra.mxu0 0
  %887 = vmatprep.subr.bf16.mxu0 0
  %888 = vmatpush1.bf16.xpose.msra.mxu0 0
  %889 = vmatprep.subr.bf16.mxu0 0
  %890 = vmatpush1.bf16.xpose.msra.mxu0 0
  %891 = vmatprep.subr.bf16.mxu0 0
  %892 = vmatpush1.bf16.xpose.msra.mxu0 0
  %893 = vmatprep.subr.bf16.mxu0 0
  %894 = vmatpush1.bf16.xpose.msra.mxu0 0
  %895 = vmatprep.subr.bf16.mxu0 0
  %896 = vmatpush1.bf16.xpose.msra.mxu0 0
  %897 = vmatprep.subr.bf16.mxu0 0
  %898 = vmatpush1.bf16.xpose.msra.mxu0 0
  %899 = vmatprep.subr.bf16.mxu0 0
  %900 = vmatpush1.bf16.xpose.msra.mxu0 %v884
  %901 = vmatprep.subr.bf16.mxu0 0
  %902 = vmatpush2.bf16.xpose.msra.mxu0 0
  %903 = vmatprep.subr.bf16.mxu0 0
  %904 = vmatpush2.bf16.xpose.msra.mxu0 0
  %905 = vmatprep.subr.bf16.mxu0 0
  %906 = vmatpush2.bf16.xpose.msra.mxu0 0
  %907 = vmatprep.subr.bf16.mxu0 0
  %908 = vmatpush2.bf16.xpose.msra.mxu0 0
  %909 = vmatprep.subr.bf16.mxu0 0
  %910 = vmatpush2.bf16.xpose.msra.mxu0 0
  %911 = vmatprep.subr.bf16.mxu0 0
  %912 = vmatpush2.bf16.xpose.msra.mxu0 0
  %913 = vmatprep.subr.bf16.mxu0 0
  %914 = vmatpush2.bf16.xpose.msra.mxu0 0
  %915 = vmatprep.subr.bf16.mxu0 0
  %916 = vmatpush2.bf16.xpose.msra.mxu0 0
  %917 = vmatprep.mubr.bf16.mxu0 0
  %918 = vmatmul.mubr.bf16.gmra.mxu0 %v883
  %v919 = vpop.f32.mrf.mxu0
  %v920 = vadd.f32 0.0, %v919
  %v921 = vpop.f32.mrf.mxu0
  %v922 = vpop.f32.mrf.mxu0
  %v923 = vadd.f32 0.0, %v922
  %v924 = vpop.f32.mrf.mxu0
  %925 = vdwg.mxu0
  %v926 = vsel %vm72, %v920, -inf
  %927 = vmax.xlane.f32.xlu0 %v926
  %v928 = vpop.xlane.xlu0 %927
  %v929 = vsel %vm72, %v923, -inf
  %930 = vmax.xlane.f32.xlu0 %v929
  %v931 = vpop.xlane.xlu0 %930
  %v932 = vsub.f32 %v920, %v928
  %v933 = vsub.f32 %v923, %v931
  %v934 = vmul.f32 %v932, 1.442695
  %v935 = vpow.pop %v934
  %v936 = vmul.f32 %v933, 1.442695
  %v937 = vpow.pop %v936
  %v938 = vsel %vm72, %v935, 0.0
  %939 = vadd.xlane.f32.xlu0 %v938
  %v940 = vpop.xlane.xlu0 %939
  %v941 = vsel %vm72, %v937, 0.0
  %942 = vadd.xlane.f32.xlu0 %v941
  %v943 = vpop.xlane.xlu0 %942
  %v944 = vrcp.pop %v940
  %v945 = vrcp.pop %v943
  %v946 = vmul.f32 %v935, %v944
  %v947 = vmul.f32 %v937, %v945
  %v948 = vpack.c.bf16 %v947, %v946
  %v949 = vpack.c.bf16 %v880, %v877
  %v951 = vsel %vm72, %v948, 0
  %953 = vmatprep.subr.bf16.mxu0 0
  %954 = vmatpush1.bf16.msra.mxu0 0
  %955 = vmatprep.subr.bf16.mxu0 0
  %956 = vmatpush1.bf16.msra.mxu0 0
  %957 = vmatprep.subr.bf16.mxu0 0
  %958 = vmatpush1.bf16.msra.mxu0 0
  %959 = vmatprep.subr.bf16.mxu0 0
  %960 = vmatpush1.bf16.msra.mxu0 0
  %961 = vmatprep.subr.bf16.mxu0 0
  %962 = vmatpush1.bf16.msra.mxu0 0
  %963 = vmatprep.subr.bf16.mxu0 0
  %964 = vmatpush1.bf16.msra.mxu0 0
  %965 = vmatprep.subr.bf16.mxu0 0
  %966 = vmatpush1.bf16.msra.mxu0 0
  %967 = vmatprep.subr.bf16.mxu0 0
  %968 = vmatpush1.bf16.msra.mxu0 %v949
  %969 = vmatprep.subr.bf16.mxu0 0
  %970 = vmatpush2.bf16.msra.mxu0 0
  %971 = vmatprep.subr.bf16.mxu0 0
  %972 = vmatpush2.bf16.msra.mxu0 0
  %973 = vmatprep.subr.bf16.mxu0 0
  %974 = vmatpush2.bf16.msra.mxu0 0
  %975 = vmatprep.subr.bf16.mxu0 0
  %976 = vmatpush2.bf16.msra.mxu0 0
  %977 = vmatprep.subr.bf16.mxu0 0
  %978 = vmatpush2.bf16.msra.mxu0 0
  %979 = vmatprep.subr.bf16.mxu0 0
  %980 = vmatpush2.bf16.msra.mxu0 0
  %981 = vmatprep.subr.bf16.mxu0 0
  %982 = vmatpush2.bf16.msra.mxu0 0
  %983 = vmatprep.subr.bf16.mxu0 0
  %984 = vmatpush2.bf16.msra.mxu0 0
  %985 = vmatprep.mubr.bf16.mxu0 0
  %986 = vmatmul.mubr.bf16.gmra.mxu0 %v951
  %v987 = vpop.f32.mrf.mxu0
  %v988 = vadd.f32 0.0, %v987
  %v989 = vpop.f32.mrf.mxu0
  %v990 = vpop.f32.mrf.mxu0
  %v991 = vadd.f32 0.0, %v990
  %v992 = vpop.f32.mrf.mxu0
  %993 = vdwg.mxu0
  %v994 = vmax.f32 %v988, 0.0
  %v995 = vmax.f32 %v991, 0.0
  %v996 = vpack.c.bf16 %v995, %v994
  %997 = vmatprep.subr.bf16.mxu0 0
  %998 = vmatpush1.bf16.xpose.msra.mxu0 0
  %999 = vmatprep.subr.bf16.mxu0 0
  %1000 = vmatpush1.bf16.xpose.msra.mxu0 0
  %1001 = vmatprep.subr.bf16.mxu0 0
  %1002 = vmatpush1.bf16.xpose.msra.mxu0 0
  %1003 = vmatprep.subr.bf16.mxu0 0
  %1004 = vmatpush1.bf16.xpose.msra.mxu0 0
  %1005 = vmatprep.subr.bf16.mxu0 0
  %1006 = vmatpush1.bf16.xpose.msra.mxu0 0
  %1007 = vmatprep.subr.bf16.mxu0 0
  %1008 = vmatpush1.bf16.xpose.msra.mxu0 0
  %1009 = vmatprep.subr.bf16.mxu0 0
  %1010 = vmatpush1.bf16.xpose.msra.mxu0 0
  %1011 = vmatprep.subr.bf16.mxu0 0
  %1012 = vmatpush1.bf16.xpose.msra.mxu0 %v996
  %1013 = vmatprep.subr.bf16.mxu0 0
  %1014 = vmatpush2.bf16.xpose.msra.mxu0 0
  %1015 = vmatprep.subr.bf16.mxu0 0
  %1016 = vmatpush2.bf16.xpose.msra.mxu0 0
  %1017 = vmatprep.subr.bf16.mxu0 0
  %1018 = vmatpush2.bf16.xpose.msra.mxu0 0
  %1019 = vmatprep.subr.bf16.mxu0 0
  %1020 = vmatpush2.bf16.xpose.msra.mxu0 0
  %1021 = vmatprep.subr.bf16.mxu0 0
  %1022 = vmatpush2.bf16.xpose.msra.mxu0 0
  %1023 = vmatprep.subr.bf16.mxu0 0
  %1024 = vmatpush2.bf16.xpose.msra.mxu0 0
  %1025 = vmatprep.subr.bf16.mxu0 0
  %1026 = vmatpush2.bf16.xpose.msra.mxu0 0
  %1027 = vmatprep.subr.bf16.mxu0 0
  %1028 = vmatpush2.bf16.xpose.msra.mxu0 0
  %1029 = vmatprep.mubr.bf16.mxu0 0
  %1030 = vmatmul.mubr.bf16.gmra.mxu0 %v44
  %v1031 = vpop.f32.mrf.mxu0
  %v1032 = vadd.f32 %v345, %v1031
  %v1033 = vpop.f32.mrf.mxu0
  %v1034 = vpop.f32.mrf.mxu0
  %v1035 = vadd.f32 %v350, %v1034
  %v1036 = vpop.f32.mrf.mxu0
  %1037 = vmatprep.mubr.bf16.mxu0 0
  %1038 = vmatmul.mubr.bf16.gmra.mxu0 %v45
  %v1039 = vpop.f32.mrf.mxu0
  %v1040 = vadd.f32 %v355, %v1039
  %v1041 = vpop.f32.mrf.mxu0
  %v1042 = vpop.f32.mrf.mxu0
  %v1043 = vadd.f32 %v360, %v1042
  %v1044 = vpop.f32.mrf.mxu0
  %1045 = vdwg.mxu0
  %v1046 = vadd.f32 %v738, %v1032
  %v1047 = vadd.f32 %v739, %v1035
  %v1048 = vadd.f32 %v740, %v1040
  %v1049 = vadd.f32 %v741, %v1043
  %s1050 = scalar_lea.vmem %s5, 64
  %1051 = vst.msk [vmem:[%s1050] sm:$0xff] %vm72, %v1046
  %1052 = vst.msk [vmem:[%s1050 + $0x8] sm:$0xff] %vm72, %v1047
  %1053 = vst.msk [vmem:[%s1050 + $0x10] sm:$0xff] %vm72, %v1048
  %1054 = vst.msk [vmem:[%s1050 + $0x18] sm:$0xff] %vm72, %v1049
  %s1055 = scalar_lea.vmem %s0, 96
  %v1056 = vld [vmem:[%s1055] sm:$0xff]
  %v1057 = vld [vmem:[%s1055 + $0x8] sm:$0xff]
  %v1058 = vld [vmem:[%s1055 + $0x10] sm:$0xff]
  %v1059 = vld [vmem:[%s1055 + $0x18] sm:$0xff]
  %v1060 = vmax.f32 %v1056, 0.0
  %v1061 = vmax.f32 %v1057, 0.0
  %v1062 = vmax.f32 %v1058, 0.0
  %v1063 = vmax.f32 %v1059, 0.0
  %v1064 = vpack.c.bf16 %v1061, %v1060
  %v1065 = vpack.c.bf16 %v1063, %v1062
  %v1067 = vsel %vm72, %v1064, 0
  %v1070 = vsel %vm72, %v1065, 0
  %1072 = vmatprep.subr.bf16.mxu0 0
  %1073 = vmatpush1.bf16.xpose.msra.mxu0 0
  %1074 = vmatprep.subr.bf16.mxu0 0
  %1075 = vmatpush1.bf16.xpose.msra.mxu0 0
  %1076 = vmatprep.subr.bf16.mxu0 0
  %1077 = vmatpush1.bf16.xpose.msra.mxu0 0
  %1078 = vmatprep.subr.bf16.mxu0 0
  %1079 = vmatpush1.bf16.xpose.msra.mxu0 0
  %1080 = vmatprep.subr.bf16.mxu0 0
  %1081 = vmatpush1.bf16.xpose.msra.mxu0 0
  %1082 = vmatprep.subr.bf16.mxu0 0
  %1083 = vmatpush1.bf16.xpose.msra.mxu0 0
  %1084 = vmatprep.subr.bf16.mxu0 0
  %1085 = vmatpush1.bf16.xpose.msra.mxu0 %v1070
  %1086 = vmatprep.subr.bf16.mxu0 0
  %1087 = vmatpush1.bf16.xpose.msra.mxu0 %v1067
  %1088 = vmatprep.subr.bf16.mxu0 0
  %1089 = vmatpush2.bf16.xpose.msra.mxu0 0
  %1090 = vmatprep.subr.bf16.mxu0 0
  %1091 = vmatpush2.bf16.xpose.msra.mxu0 0
  %1092 = vmatprep.subr.bf16.mxu0 0
  %1093 = vmatpush2.bf16.xpose.msra.mxu0 0
  %1094 = vmatprep.subr.bf16.mxu0 0
  %1095 = vmatpush2.bf16.xpose.msra.mxu0 0
  %1096 = vmatprep.subr.bf16.mxu0 0
  %1097 = vmatpush2.bf16.xpose.msra.mxu0 0
  %1098 = vmatprep.subr.bf16.mxu0 0
  %1099 = vmatpush2.bf16.xpose.msra.mxu0 0
  %1100 = vmatprep.subr.bf16.mxu0 0
  %1101 = vmatpush2.bf16.xpose.msra.mxu0 0
  %1102 = vmatprep.subr.bf16.mxu0 0
  %1103 = vmatpush2.bf16.xpose.msra.mxu0 0
  %1104 = vmatprep.mubr.bf16.mxu0 0
  %1105 = vmatmul.mubr.bf16.gmra.mxu0 %v74
  %v1106 = vpop.f32.mrf.mxu0
  %v1107 = vadd.f32 0.0, %v1106
  %v1108 = vpop.f32.mrf.mxu0
  %v1109 = vpop.f32.mrf.mxu0
  %v1110 = vadd.f32 0.0, %v1109
  %v1111 = vpop.f32.mrf.mxu0
  %1112 = vdwg.mxu0
  %v1113 = vpack.c.bf16 %v1110, %v1107
  %v1115 = vsel %vm140, %v1113, 0
  %1117 = vmatprep.subr.bf16.mxu0 0
  %1118 = vmatpush1.bf16.msra.mxu0 0
  %1119 = vmatprep.subr.bf16.mxu0 0
  %1120 = vmatpush1.bf16.msra.mxu0 0
  %1121 = vmatprep.subr.bf16.mxu0 0
  %1122 = vmatpush1.bf16.msra.mxu0 0
  %1123 = vmatprep.subr.bf16.mxu0 0
  %1124 = vmatpush1.bf16.msra.mxu0 0
  %1125 = vmatprep.subr.bf16.mxu0 0
  %1126 = vmatpush1.bf16.msra.mxu0 0
  %1127 = vmatprep.subr.bf16.mxu0 0
  %1128 = vmatpush1.bf16.msra.mxu0 0
  %1129 = vmatprep.subr.bf16.mxu0 %v37
  %1130 = vmatpush1.bf16.msra.mxu0 %v36
  %1131 = vmatprep.subr.bf16.mxu0 %v34
  %1132 = vmatpush1.bf16.msra.mxu0 %v33
  %1133 = vmatprep.subr.bf16.mxu0 0
  %1134 = vmatpush2.bf16.msra.mxu0 0
  %1135 = vmatprep.subr.bf16.mxu0 0
  %1136 = vmatpush2.bf16.msra.mxu0 0
  %1137 = vmatprep.subr.bf16.mxu0 0
  %1138 = vmatpush2.bf16.msra.mxu0 0
  %1139 = vmatprep.subr.bf16.mxu0 0
  %1140 = vmatpush2.bf16.msra.mxu0 0
  %1141 = vmatprep.subr.bf16.mxu0 0
  %1142 = vmatpush2.bf16.msra.mxu0 0
  %1143 = vmatprep.subr.bf16.mxu0 0
  %1144 = vmatpush2.bf16.msra.mxu0 0
  %1145 = vmatprep.subr.bf16.mxu0 0
  %1146 = vmatpush2.bf16.msra.mxu0 0
  %1147 = vmatprep.subr.bf16.mxu0 0
  %1148 = vmatpush2.bf16.msra.mxu0 0
  %1149 = vmatprep.mubr.bf16.mxu0 0
  %1150 = vmatmul.mubr.bf16.gmra.mxu0 %v1115
  %v1151 = vpop.f32.mrf.mxu0
  %v1152 = vadd.f32 %v128, %v1151
  %v1153 = vpop.f32.mrf.mxu0
  %v1154 = vadd.f32 %v132, %v1153
  %v1155 = vpop.f32.mrf.mxu0
  %v1156 = vadd.f32 %v128, %v1155
  %v1157 = vpop.f32.mrf.mxu0
  %v1158 = vadd.f32 %v132, %v1157
  %1159 = vdwg.mxu0
  %1160 = vmatprep.subr.bf16.mxu0 0
  %1161 = vmatpush1.bf16.msra.mxu0 0
  %1162 = vmatprep.subr.bf16.mxu0 0
  %1163 = vmatpush1.bf16.msra.mxu0 0
  %1164 = vmatprep.subr.bf16.mxu0 0
  %1165 = vmatpush1.bf16.msra.mxu0 0
  %1166 = vmatprep.subr.bf16.mxu0 0
  %1167 = vmatpush1.bf16.msra.mxu0 0
  %1168 = vmatprep.subr.bf16.mxu0 0
  %1169 = vmatpush1.bf16.msra.mxu0 0
  %1170 = vmatprep.subr.bf16.mxu0 0
  %1171 = vmatpush1.bf16.msra.mxu0 0
  %1172 = vmatprep.subr.bf16.mxu0 0
  %1173 = vmatpush1.bf16.msra.mxu0 %v38
  %1174 = vmatprep.subr.bf16.mxu0 0
  %1175 = vmatpush1.bf16.msra.mxu0 %v35
  %1176 = vmatprep.subr.bf16.mxu0 0
  %1177 = vmatpush2.bf16.msra.mxu0 0
  %1178 = vmatprep.subr.bf16.mxu0 0
  %1179 = vmatpush2.bf16.msra.mxu0 0
  %1180 = vmatprep.subr.bf16.mxu0 0
  %1181 = vmatpush2.bf16.msra.mxu0 0
  %1182 = vmatprep.subr.bf16.mxu0 0
  %1183 = vmatpush2.bf16.msra.mxu0 0
  %1184 = vmatprep.subr.bf16.mxu0 0
  %1185 = vmatpush2.bf16.msra.mxu0 0
  %1186 = vmatprep.subr.bf16.mxu0 0
  %1187 = vmatpush2.bf16.msra.mxu0 0
  %1188 = vmatprep.subr.bf16.mxu0 0
  %1189 = vmatpush2.bf16.msra.mxu0 0
  %1190 = vmatprep.subr.bf16.mxu0 0
  %1191 = vmatpush2.bf16.msra.mxu0 0
  %1192 = vmatprep.mubr.bf16.mxu0 0
  %1193 = vmatmul.mubr.bf16.gmra.mxu0 %v1115
  %v1194 = vpop.f32.mrf.mxu0
  %v1195 = vadd.f32 %v136, %v1194
  %v1196 = vpop.f32.mrf.mxu0
  %v1197 = vpop.f32.mrf.mxu0
  %v1198 = vadd.f32 %v136, %v1197
  %v1199 = vpop.f32.mrf.mxu0
  %1200 = vdwg.mxu0
  %v1201 = vpack.c.bf16 %v1156, %v1152
  %v1202 = vpack.c.bf16 %v1158, %v1154
  %1203 = vmatprep.subr.bf16.mxu0 0
  %1204 = vmatpush1.bf16.xpose.msra.mxu0 0
  %1205 = vmatprep.subr.bf16.mxu0 0
  %1206 = vmatpush1.bf16.xpose.msra.mxu0 0
  %1207 = vmatprep.subr.bf16.mxu0 0
  %1208 = vmatpush1.bf16.xpose.msra.mxu0 0
  %1209 = vmatprep.subr.bf16.mxu0 0
  %1210 = vmatpush1.bf16.xpose.msra.mxu0 0
  %1211 = vmatprep.subr.bf16.mxu0 0
  %1212 = vmatpush1.bf16.xpose.msra.mxu0 0
  %1213 = vmatprep.subr.bf16.mxu0 0
  %1214 = vmatpush1.bf16.xpose.msra.mxu0 0
  %1215 = vmatprep.subr.bf16.mxu0 0
  %1216 = vmatpush1.bf16.xpose.msra.mxu0 0
  %1217 = vmatprep.subr.bf16.mxu0 0
  %1218 = vmatpush1.bf16.xpose.msra.mxu0 %v1202
  %1219 = vmatprep.subr.bf16.mxu0 0
  %1220 = vmatpush2.bf16.xpose.msra.mxu0 0
  %1221 = vmatprep.subr.bf16.mxu0 0
  %1222 = vmatpush2.bf16.xpose.msra.mxu0 0
  %1223 = vmatprep.subr.bf16.mxu0 0
  %1224 = vmatpush2.bf16.xpose.msra.mxu0 0
  %1225 = vmatprep.subr.bf16.mxu0 0
  %1226 = vmatpush2.bf16.xpose.msra.mxu0 0
  %1227 = vmatprep.subr.bf16.mxu0 0
  %1228 = vmatpush2.bf16.xpose.msra.mxu0 0
  %1229 = vmatprep.subr.bf16.mxu0 0
  %1230 = vmatpush2.bf16.xpose.msra.mxu0 0
  %1231 = vmatprep.subr.bf16.mxu0 0
  %1232 = vmatpush2.bf16.xpose.msra.mxu0 0
  %1233 = vmatprep.subr.bf16.mxu0 0
  %1234 = vmatpush2.bf16.xpose.msra.mxu0 0
  %1235 = vmatprep.mubr.bf16.mxu0 0
  %1236 = vmatmul.mubr.bf16.gmra.mxu0 %v1201
  %v1237 = vpop.f32.mrf.mxu0
  %v1238 = vadd.f32 0.0, %v1237
  %v1239 = vpop.f32.mrf.mxu0
  %v1240 = vpop.f32.mrf.mxu0
  %v1241 = vadd.f32 0.0, %v1240
  %v1242 = vpop.f32.mrf.mxu0
  %1243 = vdwg.mxu0
  %v1244 = vsel %vm72, %v1238, -inf
  %1245 = vmax.xlane.f32.xlu0 %v1244
  %v1246 = vpop.xlane.xlu0 %1245
  %v1247 = vsel %vm72, %v1241, -inf
  %1248 = vmax.xlane.f32.xlu0 %v1247
  %v1249 = vpop.xlane.xlu0 %1248
  %v1250 = vsub.f32 %v1238, %v1246
  %v1251 = vsub.f32 %v1241, %v1249
  %v1252 = vmul.f32 %v1250, 1.442695
  %v1253 = vpow.pop %v1252
  %v1254 = vmul.f32 %v1251, 1.442695
  %v1255 = vpow.pop %v1254
  %v1256 = vsel %vm72, %v1253, 0.0
  %1257 = vadd.xlane.f32.xlu0 %v1256
  %v1258 = vpop.xlane.xlu0 %1257
  %v1259 = vsel %vm72, %v1255, 0.0
  %1260 = vadd.xlane.f32.xlu0 %v1259
  %v1261 = vpop.xlane.xlu0 %1260
  %v1262 = vrcp.pop %v1258
  %v1263 = vrcp.pop %v1261
  %v1264 = vmul.f32 %v1253, %v1262
  %v1265 = vmul.f32 %v1255, %v1263
  %v1266 = vpack.c.bf16 %v1265, %v1264
  %v1267 = vpack.c.bf16 %v1198, %v1195
  %v1269 = vsel %vm72, %v1266, 0
  %1271 = vmatprep.subr.bf16.mxu0 0
  %1272 = vmatpush1.bf16.msra.mxu0 0
  %1273 = vmatprep.subr.bf16.mxu0 0
  %1274 = vmatpush1.bf16.msra.mxu0 0
  %1275 = vmatprep.subr.bf16.mxu0 0
  %1276 = vmatpush1.bf16.msra.mxu0 0
  %1277 = vmatprep.subr.bf16.mxu0 0
  %1278 = vmatpush1.bf16.msra.mxu0 0
  %1279 = vmatprep.subr.bf16.mxu0 0
  %1280 = vmatpush1.bf16.msra.mxu0 0
  %1281 = vmatprep.subr.bf16.mxu0 0
  %1282 = vmatpush1.bf16.msra.mxu0 0
  %1283 = vmatprep.subr.bf16.mxu0 0
  %1284 = vmatpush1.bf16.msra.mxu0 0
  %1285 = vmatprep.subr.bf16.mxu0 0
  %1286 = vmatpush1.bf16.msra.mxu0 %v1267
  %1287 = vmatprep.subr.bf16.mxu0 0
  %1288 = vmatpush2.bf16.msra.mxu0 0
  %1289 = vmatprep.subr.bf16.mxu0 0
  %1290 = vmatpush2.bf16.msra.mxu0 0
  %1291 = vmatprep.subr.bf16.mxu0 0
  %1292 = vmatpush2.bf16.msra.mxu0 0
  %1293 = vmatprep.subr.bf16.mxu0 0
  %1294 = vmatpush2.bf16.msra.mxu0 0
  %1295 = vmatprep.subr.bf16.mxu0 0
  %1296 = vmatpush2.bf16.msra.mxu0 0
  %1297 = vmatprep.subr.bf16.mxu0 0
  %1298 = vmatpush2.bf16.msra.mxu0 0
  %1299 = vmatprep.subr.bf16.mxu0 0
  %1300 = vmatpush2.bf16.msra.mxu0 0
  %1301 = vmatprep.subr.bf16.mxu0 0
  %1302 = vmatpush2.bf16.msra.mxu0 0
  %1303 = vmatprep.mubr.bf16.mxu0 0
  %1304 = vmatmul.mubr.bf16.gmra.mxu0 %v1269
  %v1305 = vpop.f32.mrf.mxu0
  %v1306 = vadd.f32 0.0, %v1305
  %v1307 = vpop.f32.mrf.mxu0
  %v1308 = vpop.f32.mrf.mxu0
  %v1309 = vadd.f32 0.0, %v1308
  %v1310 = vpop.f32.mrf.mxu0
  %1311 = vdwg.mxu0
  %v1312 = vmax.f32 %v1306, 0.0
  %v1313 = vmax.f32 %v1309, 0.0
  %v1314 = vpack.c.bf16 %v1313, %v1312
  %1315 = vmatprep.subr.bf16.mxu0 0
  %1316 = vmatpush1.bf16.xpose.msra.mxu0 0
  %1317 = vmatprep.subr.bf16.mxu0 0
  %1318 = vmatpush1.bf16.xpose.msra.mxu0 0
  %1319 = vmatprep.subr.bf16.mxu0 0
  %1320 = vmatpush1.bf16.xpose.msra.mxu0 0
  %1321 = vmatprep.subr.bf16.mxu0 0
  %1322 = vmatpush1.bf16.xpose.msra.mxu0 0
  %1323 = vmatprep.subr.bf16.mxu0 0
  %1324 = vmatpush1.bf16.xpose.msra.mxu0 0
  %1325 = vmatprep.subr.bf16.mxu0 0
  %1326 = vmatpush1.bf16.xpose.msra.mxu0 0
  %1327 = vmatprep.subr.bf16.mxu0 0
  %1328 = vmatpush1.bf16.xpose.msra.mxu0 0
  %1329 = vmatprep.subr.bf16.mxu0 0
  %1330 = vmatpush1.bf16.xpose.msra.mxu0 %v1314
  %1331 = vmatprep.subr.bf16.mxu0 0
  %1332 = vmatpush2.bf16.xpose.msra.mxu0 0
  %1333 = vmatprep.subr.bf16.mxu0 0
  %1334 = vmatpush2.bf16.xpose.msra.mxu0 0
  %1335 = vmatprep.subr.bf16.mxu0 0
  %1336 = vmatpush2.bf16.xpose.msra.mxu0 0
  %1337 = vmatprep.subr.bf16.mxu0 0
  %1338 = vmatpush2.bf16.xpose.msra.mxu0 0
  %1339 = vmatprep.subr.bf16.mxu0 0
  %1340 = vmatpush2.bf16.xpose.msra.mxu0 0
  %1341 = vmatprep.subr.bf16.mxu0 0
  %1342 = vmatpush2.bf16.xpose.msra.mxu0 0
  %1343 = vmatprep.subr.bf16.mxu0 0
  %1344 = vmatpush2.bf16.xpose.msra.mxu0 0
  %1345 = vmatprep.subr.bf16.mxu0 0
  %1346 = vmatpush2.bf16.xpose.msra.mxu0 0
  %1347 = vmatprep.mubr.bf16.mxu0 0
  %1348 = vmatmul.mubr.bf16.gmra.mxu0 %v44
  %v1349 = vpop.f32.mrf.mxu0
  %v1350 = vadd.f32 %v345, %v1349
  %v1351 = vpop.f32.mrf.mxu0
  %v1352 = vpop.f32.mrf.mxu0
  %v1353 = vadd.f32 %v350, %v1352
  %v1354 = vpop.f32.mrf.mxu0
  %1355 = vmatprep.mubr.bf16.mxu0 0
  %1356 = vmatmul.mubr.bf16.gmra.mxu0 %v45
  %v1357 = vpop.f32.mrf.mxu0
  %v1358 = vadd.f32 %v355, %v1357
  %v1359 = vpop.f32.mrf.mxu0
  %v1360 = vpop.f32.mrf.mxu0
  %v1361 = vadd.f32 %v360, %v1360
  %v1362 = vpop.f32.mrf.mxu0
  %1363 = vdwg.mxu0
  %v1364 = vadd.f32 %v1056, %v1350
  %v1365 = vadd.f32 %v1057, %v1353
  %v1366 = vadd.f32 %v1058, %v1358
  %v1367 = vadd.f32 %v1059, %v1361
  %s1368 = scalar_lea.vmem %s5, 96
  %1369 = vst.msk [vmem:[%s1368] sm:$0xff] %vm72, %v1364
  %1370 = vst.msk [vmem:[%s1368 + $0x8] sm:$0xff] %vm72, %v1365
  %1371 = vst.msk [vmem:[%s1368 + $0x10] sm:$0xff] %vm72, %v1366
  %1372 = vst.msk [vmem:[%s1368 + $0x18] sm:$0xff] %vm72, %v1367
  // Predicated region
  $region22: #{tpu_custom_call.1} parent=0 // pred_check
    _
  $region23: #{tpu_custom_call.1} parent=0 // pred_check_branch
    %1374 = sbr.rel (0) target = $region25
  $region24: #{tpu_custom_call.1} parent=0 // pred_region
    _
  $region25: #{tpu_custom_call.1} parent=0 // pred_fallthru
    _
  // Predicated region
  $region26: #{tpu_custom_call.1} parent=0 // pred_check
    _
  $region27: #{tpu_custom_call.1} parent=0 // pred_check_branch
    %1376 = sbr.rel (0) target = $region29
  $region28: #{tpu_custom_call.1} parent=0 // pred_region
    _
  $region29: #{tpu_custom_call.1} parent=0 // pred_fallthru
    _

</llo_original>
